<compile_context>
chip_gen: v7x
topology: tpu7x:2x2x1
jax: 0.10.0
libtpu: 0.0.40
codegen_flags: <defaults>
</compile_context>

<pallas_src>
import math

import jax
import jax.numpy as jnp
from jax import lax
from jax.experimental import pallas as pl
from jax.experimental.pallas import tpu as pltpu

_LANE = 128
_SUBLANE = 8
_TAU = 2.0 * math.pi
_TAN_PI_8 = 0.4142135623730951


def _atan_poly(z):
    # Cephes atanf core polynomial, valid for |z| <= tan(pi/8).
    z2 = z * z
    p = z2 * 8.05374449538e-2 - 1.38776856032e-1
    p = p * z2 + 1.99777106478e-1
    p = p * z2 - 3.33329491539e-1
    return p * z2 * z + z


def _atan2(y, x):
    """atan2 from basic VPU ops only: abs/min/max/select, one divide, polynomial."""
    ax = jnp.abs(x)
    ay = jnp.abs(y)
    hi = jnp.maximum(ax, ay)
    lo = jnp.minimum(ax, ay)
    use_hi = lo > _TAN_PI_8 * hi                      # == (lo/hi > tan(pi/8)), no divide
    num = jnp.where(use_hi, lo - hi, lo)              # (t-1)/(t+1) and t share one divide
    den = jnp.maximum(jnp.where(use_hi, lo + hi, hi), 1e-30)
    r = _atan_poly(num / den)
    r = jnp.where(use_hi, r + (math.pi / 4), r)
    r = jnp.where(ay > ax, (math.pi / 2) - r, r)
    r = jnp.where(x < 0.0, math.pi - r, r)
    r = jnp.where(y < 0.0, -r, r)
    return r


def _make_spin_kernel(n_cmap, n_ch, degree, rows, n_inner):
    dn = float(degree) * float(n_cmap)
    pow2 = n_cmap > 0 and (n_cmap & (n_cmap - 1)) == 0
    # Half-angle form only valid when degree is an integer (the 2*pi ambiguity then
    # shifts the bin index by an exact multiple of n_cmap, removed by the mod).
    half_angle = float(degree).is_integer()

    def kernel(cam_ref, cmap_ref, sn_ref, o_ref):
        # cam_ref : (4,)            f32 SMEM  -- camera_orientation_conj (w, x, y, z)
        # cmap_ref: (cpad, n_cmap)  f32 VMEM  -- transposed colourmap, rows >= n_ch, zero-padded
        # sn_ref  : (3, tile_r, 128) f32 VMEM -- planar surface normals
        # o_ref   : (n_ch, tile_r, 128) f32 VMEM -- planar colours
        q0 = cam_ref[0]
        q1 = cam_ref[1]
        q2 = cam_ref[2]
        q3 = cam_ref[3]

        cmap_t = cmap_ref[...]                                      # (cpad, n_cmap), loop-invariant
        k_iota = lax.broadcasted_iota(jnp.int32, (n_cmap, _LANE), 0)  # constant, hoisted

        def body(it, carry):
            r0 = pl.multiple_of(it * rows, rows)
            nx = sn_ref[0, pl.ds(r0, rows), :]
            ny = sn_ref[1, pl.ds(r0, rows), :]
            nz = sn_ref[2, pl.ds(r0, rows), :]

            # (0, nx, ny, nz) (x) (q0, q1, q2, q3): Hamilton product, scalar-first.
            # TODO(synk): Q.multiply's convention is assumed Hamilton / scalar-first
            # (as implied by F.pad([1, 0])); verify against the original Q.multiply.
            a = -(nx * q1 + ny * q2 + nz * q3)
            b = nx * q0 + ny * q3 - nz * q2
            c = ny * q0 + nz * q1 - nx * q3
            d = nz * q0 + nx * q2 - ny * q1

            s2 = b * b + c * c + d * d
            aa = a * a
            # Exact identity: sqrt((a^2 - s2)^2 + (2 a sqrt(s2))^2) == a^2 + s2.
            modulus = aa + s2

            if half_angle:
                ang = 2.0 * _atan2(jnp.sqrt(s2), a)
            else:
                real = aa - s2
                imag = 2.0 * a * jnp.sqrt(s2)
                ang = _atan2(imag, real)

            scaled = (ang * (1.0 / _TAU) + 0.5) * dn
            idx = jnp.floor(scaled).astype(jnp.int32)
            if pow2:
                idx = jnp.bitwise_and(idx, n_cmap - 1)      # total (Python-style) modulo
            else:
                idx = lax.rem(idx, n_cmap)
                idx = jnp.where(idx < 0, idx + n_cmap, idx)

            # Colourmap lookup: per sublane-row one-hot + tiny MXU matmul.
            #   cols[ch, lane] = sum_k cmap_t[ch, k] * (idx[lane] == k) = cmap[idx[lane], ch]
            for r in range(rows):
                sel = (k_iota == idx[r:r + 1, :]).astype(jnp.float32)          # (n_cmap, 128)
                cols = jnp.dot(cmap_t, sel, preferred_element_type=jnp.float32)  # (cpad, 128)
                vals = cols[:n_ch, :] * modulus[r:r + 1, :]                    # (n_ch, 128)
                row = r0 + r
                for ch in range(n_ch):
                    o_ref[ch, pl.ds(row, 1), :] = vals[ch:ch + 1, :].astype(o_ref.dtype)
            return carry

        lax.fori_loop(0, n_inner, body, 0)

    return kernel


def spin_shader_pallas(camera_orientation_conj, surface_normals, cyclic_colourmap,
                       degree, *, max_rows_per_block=1024):
    """camera_orientation_conj: (4,), surface_normals: (..., 3),
    cyclic_colourmap: (n_cmap, C), degree: python scalar  ->  (..., C)."""
    assert surface_normals.shape[-1] == 3
    lead_shape = surface_normals.shape[:-1]
    cam = jnp.asarray(camera_orientation_conj, jnp.float32).reshape(4)
    cmap = jnp.asarray(cyclic_colourmap, jnp.float32)
    n_cmap, n_ch = cmap.shape

    # Transposed colourmap, rows padded to a multiple of 8 for a clean MXU lhs.
    cpad = max(8, ((n_ch + 7) // 8) * 8)
    cmap_t = jnp.zeros((cpad, n_cmap), jnp.float32).at[:n_ch, :].set(cmap.T)

    n = 1
    for dim in lead_shape:
        n *= dim

    # Planar, lane-dense layout: (pixels, 3) -> (3, R, 128). Only the ragged tail is padded.
    block_px = _LANE * _SUBLANE
    n_pad = ((n + block_px - 1) // block_px) * block_px
    sn = surface_normals.reshape(n, 3).astype(jnp.float32)
    if n_pad != n:
        sn = jnp.pad(sn, ((0, n_pad - n), (0, 0)))
    r_total = n_pad // _LANE                          # multiple of 8
    sn_planar = sn.T.reshape(3, r_total, _LANE)

    # Big blocks to amortise per-step overhead, but always >= 2 grid steps when there is
    # enough work so both v7x TensorCores are used (dimension_semantics=("parallel",)).
    tile_r = min(max_rows_per_block, r_total)
    if tile_r == r_total and r_total >= 16:
        tile_r = ((r_total // 2 + 7) // 8) * 8
    rows = 8                                          # inner chunk = one f32 vreg (8, 128)
    n_inner = tile_r // rows
    grid = (pl.cdiv(r_total, tile_r),)

    kernel = _make_spin_kernel(n_cmap, n_ch, degree, rows, n_inner)

    out_planar = pl.pallas_call(
        kernel,
        out_shape=jax.ShapeDtypeStruct((n_ch, r_total, _LANE), jnp.float32),
        grid_spec=pltpu.PrefetchScalarGridSpec(
            num_scalar_prefetch=0,
            grid=grid,
            in_specs=[
                pl.BlockSpec(memory_space=pltpu.MemorySpace.SMEM),        # camera quaternion
                pl.BlockSpec((cpad, n_cmap), lambda i: (0, 0)),           # colourmap (VMEM)
                pl.BlockSpec((3, tile_r, _LANE), lambda i: (0, i, 0)),    # planar normals
            ],
            out_specs=pl.BlockSpec((n_ch, tile_r, _LANE), lambda i: (0, i, 0)),
        ),
        compiler_params=pltpu.CompilerParams(
            dimension_semantics=("parallel",),
            vmem_limit_bytes=32 * 1024 * 1024,
        ),
    )(cam, cmap_t, sn_planar)

    out = out_planar.reshape(n_ch, n_pad)[:, :n].T.reshape(*lead_shape, n_ch)
    return out.astype(surface_normals.dtype)


def spin_shader_ref(camera_orientation_conj, surface_normals, cyclic_colourmap, degree):
    """Pure-JAX reference: direct port of the PyTorch module."""
    p = jnp.concatenate(
        [jnp.zeros_like(surface_normals[..., :1]), surface_normals], axis=-1)
    q = camera_orientation_conj
    p0, p1, p2, p3 = p[..., 0], p[..., 1], p[..., 2], p[..., 3]
    q0, q1, q2, q3 = q[0], q[1], q[2], q[3]
    a = p0 * q0 - p1 * q1 - p2 * q2 - p3 * q3
    b = p0 * q1 + p1 * q0 + p2 * q3 - p3 * q2
    c = p0 * q2 - p1 * q3 + p2 * q0 + p3 * q1
    d = p0 * q3 + p1 * q2 - p2 * q1 + p3 * q0
    s2 = b * b + c * c + d * d
    real = a * a - s2
    imag = jnp.sqrt(s2) * a * 2.0
    n_cmap = cyclic_colourmap.shape[0]
    frac = jnp.arctan2(imag, real) / _TAU + 0.5
    idx = jnp.floor(frac * degree * n_cmap).astype(jnp.int32) % n_cmap
    colour = cyclic_colourmap[idx]
    modulus = jnp.sqrt(real * real + imag * imag)
    return colour * modulus[..., None]


if __name__ == "__main__":
    key = jax.random.PRNGKey(0)
    k1, k2, k3 = jax.random.split(key, 3)

    B, H, W = 2, 16, 16
    n_cmap, n_ch = 64, 3
    degree = 2

    surface_normals = jax.random.normal(k1, (B, H, W, 3), dtype=jnp.float32)
    surface_normals = surface_normals / jnp.linalg.norm(
        surface_normals, axis=-1, keepdims=True)

    camera_orientation_conj = jax.random.normal(k2, (4,), dtype=jnp.float32)
    camera_orientation_conj = camera_orientation_conj / jnp.linalg.norm(
        camera_orientation_conj)

    cyclic_colourmap = jax.random.uniform(k3, (n_cmap, n_ch), dtype=jnp.float32)

    out = spin_shader_pallas(
        camera_orientation_conj, surface_normals, cyclic_colourmap, degree)
    out = jax.block_until_ready(out)

    ref = spin_shader_ref(
        camera_orientation_conj, surface_normals, cyclic_colourmap, degree)

    assert out.shape == (B, H, W, n_ch), out.shape
    assert bool(jnp.isfinite(out).all())

    # The colourmap index is a floor() of the angle, so a ~1e-7-rad difference between the
    # in-kernel atan2 polynomial (and the unwrapped half-angle form) and XLA's atan2 can
    # very rarely flip a pixel into the neighbouring colour bin. Require near-exact
    # agreement on >= 99% of pixels.
    err = jnp.abs(out - ref)
    tol = 1e-4 + 1e-4 * jnp.abs(ref)
    pixel_ok = jnp.all(err <= tol, axis=-1)
    match_frac = float(jnp.mean(pixel_ok.astype(jnp.float32)))
    assert match_frac >= 0.99, f"only {match_frac:.4f} of pixels match the reference"

    print("KERNEL_OK")
</pallas_src>

<mosaic_0001>
module attributes {stable_mosaic.version = 11 : i64} {
  func.func @kernel(%arg0: i32, %arg1: memref<4xf32, #tpu.memory_space<smem>>, %arg2: memref<8x64xf32, #tpu.memory_space<vmem>>, %arg3: memref<3x8x128xf32, #tpu.memory_space<vmem>>, %arg4: memref<3x8x128xf32, #tpu.memory_space<vmem>>) attributes {dimension_semantics = [#tpu.dimension_semantics<parallel>], iteration_bounds = array<i64: 1>, scalar_prefetch = 0 : i64, scratch_operands = 0 : i64, tpu.core_type = #tpu.core_type<tc>, window_params = [{transform_indices = @transform_0, window_bounds = array<i64: 4>}, {pipeline_mode = #tpu.pipeline_mode<synchronous>, transform_indices = @transform_1, window_bounds = array<i64: 8, 64>}, {transform_indices = @transform_2, window_bounds = array<i64: 3, 8, 128>}, {transform_indices = @transform_3, window_bounds = array<i64: 3, 8, 128>}]} {
    %c0 = arith.constant 0 : index
    %0 = memref.load %arg1[%c0] : memref<4xf32, #tpu.memory_space<smem>>
    %c1 = arith.constant 1 : index
    %1 = memref.load %arg1[%c1] : memref<4xf32, #tpu.memory_space<smem>>
    %c2 = arith.constant 2 : index
    %2 = memref.load %arg1[%c2] : memref<4xf32, #tpu.memory_space<smem>>
    %c3 = arith.constant 3 : index
    %3 = memref.load %arg1[%c3] : memref<4xf32, #tpu.memory_space<smem>>
    %c0_0 = arith.constant 0 : index
    %c0_1 = arith.constant 0 : index
    %4 = vector.load %arg2[%c0_0, %c0_1] : memref<8x64xf32, #tpu.memory_space<vmem>>, vector<8x64xf32>
    %5 = tpu.iota {dimensions = array<i32: 0>} : vector<64x128xi32>
    %c0_i32 = arith.constant 0 : i32
    %c8_i32 = arith.constant 8 : i32
    %6 = arith.muli %c0_i32, %c8_i32 : i32
    %7 = tpu.assume_multiple %6, 8 : i32
    %c0_2 = arith.constant 0 : index
    %8 = arith.index_cast %7 : i32 to index
    %c0_3 = arith.constant 0 : index
    %9 = vector.load %arg3[%c0_2, %8, %c0_3] : memref<3x8x128xf32, #tpu.memory_space<vmem>>, vector<1x8x128xf32>
    %10 = vector.shape_cast %9 : vector<1x8x128xf32> to vector<8x128xf32>
    %c1_4 = arith.constant 1 : index
    %11 = arith.index_cast %7 : i32 to index
    %c0_5 = arith.constant 0 : index
    %12 = vector.load %arg3[%c1_4, %11, %c0_5] : memref<3x8x128xf32, #tpu.memory_space<vmem>>, vector<1x8x128xf32>
    %13 = vector.shape_cast %12 : vector<1x8x128xf32> to vector<8x128xf32>
    %c2_6 = arith.constant 2 : index
    %14 = arith.index_cast %7 : i32 to index
    %c0_7 = arith.constant 0 : index
    %15 = vector.load %arg3[%c2_6, %14, %c0_7] : memref<3x8x128xf32, #tpu.memory_space<vmem>>, vector<1x8x128xf32>
    %16 = vector.shape_cast %15 : vector<1x8x128xf32> to vector<8x128xf32>
    %17 = vector.broadcast %1 : f32 to vector<8x128xf32>
    %18 = arith.mulf %10, %17 : vector<8x128xf32>
    %19 = vector.broadcast %2 : f32 to vector<8x128xf32>
    %20 = arith.mulf %13, %19 : vector<8x128xf32>
    %21 = arith.addf %18, %20 : vector<8x128xf32>
    %22 = vector.broadcast %3 : f32 to vector<8x128xf32>
    %23 = arith.mulf %16, %22 : vector<8x128xf32>
    %24 = arith.addf %21, %23 : vector<8x128xf32>
    %cst = arith.constant 0.000000e+00 : f32
    %25 = vector.broadcast %cst : f32 to vector<8x128xf32>
    %26 = arith.subf %25, %24 : vector<8x128xf32>
    %27 = vector.broadcast %0 : f32 to vector<8x128xf32>
    %28 = arith.mulf %10, %27 : vector<8x128xf32>
    %29 = vector.broadcast %3 : f32 to vector<8x128xf32>
    %30 = arith.mulf %13, %29 : vector<8x128xf32>
    %31 = arith.addf %28, %30 : vector<8x128xf32>
    %32 = vector.broadcast %2 : f32 to vector<8x128xf32>
    %33 = arith.mulf %16, %32 : vector<8x128xf32>
    %34 = arith.subf %31, %33 : vector<8x128xf32>
    %35 = vector.broadcast %0 : f32 to vector<8x128xf32>
    %36 = arith.mulf %13, %35 : vector<8x128xf32>
    %37 = vector.broadcast %1 : f32 to vector<8x128xf32>
    %38 = arith.mulf %16, %37 : vector<8x128xf32>
    %39 = arith.addf %36, %38 : vector<8x128xf32>
    %40 = vector.broadcast %3 : f32 to vector<8x128xf32>
    %41 = arith.mulf %10, %40 : vector<8x128xf32>
    %42 = arith.subf %39, %41 : vector<8x128xf32>
    %43 = vector.broadcast %0 : f32 to vector<8x128xf32>
    %44 = arith.mulf %16, %43 : vector<8x128xf32>
    %45 = vector.broadcast %2 : f32 to vector<8x128xf32>
    %46 = arith.mulf %10, %45 : vector<8x128xf32>
    %47 = arith.addf %44, %46 : vector<8x128xf32>
    %48 = vector.broadcast %1 : f32 to vector<8x128xf32>
    %49 = arith.mulf %13, %48 : vector<8x128xf32>
    %50 = arith.subf %47, %49 : vector<8x128xf32>
    %51 = arith.mulf %34, %34 : vector<8x128xf32>
    %52 = arith.mulf %42, %42 : vector<8x128xf32>
    %53 = arith.addf %51, %52 : vector<8x128xf32>
    %54 = arith.mulf %50, %50 : vector<8x128xf32>
    %55 = arith.addf %53, %54 : vector<8x128xf32>
    %56 = arith.mulf %26, %26 : vector<8x128xf32>
    %57 = arith.addf %56, %55 : vector<8x128xf32>
    %58 = math.sqrt %55 : vector<8x128xf32>
    %59 = math.absf %26 : vector<8x128xf32>
    %60 = math.absf %58 : vector<8x128xf32>
    %61 = arith.maximumf %59, %60 : vector<8x128xf32>
    %62 = arith.minimumf %59, %60 : vector<8x128xf32>
    %cst_8 = arith.constant 0.414213568 : f32
    %63 = vector.broadcast %cst_8 : f32 to vector<8x128xf32>
    %64 = arith.mulf %63, %61 : vector<8x128xf32>
    %65 = arith.cmpf ogt, %62, %64 : vector<8x128xf32>
    %66 = arith.subf %62, %61 : vector<8x128xf32>
    %67 = arith.select %65, %66, %62 : vector<8x128xi1>, vector<8x128xf32>
    %68 = arith.addf %62, %61 : vector<8x128xf32>
    %69 = arith.select %65, %68, %61 : vector<8x128xi1>, vector<8x128xf32>
    %cst_9 = arith.constant 1.000000e-30 : f32
    %70 = vector.broadcast %cst_9 : f32 to vector<8x128xf32>
    %71 = arith.maximumf %69, %70 : vector<8x128xf32>
    %72 = arith.divf %67, %71 : vector<8x128xf32>
    %73 = arith.mulf %72, %72 : vector<8x128xf32>
    %cst_10 = arith.constant 0.0805374458 : f32
    %74 = vector.broadcast %cst_10 : f32 to vector<8x128xf32>
    %75 = arith.mulf %73, %74 : vector<8x128xf32>
    %cst_11 = arith.constant 0.138776854 : f32
    %76 = vector.broadcast %cst_11 : f32 to vector<8x128xf32>
    %77 = arith.subf %75, %76 : vector<8x128xf32>
    %78 = arith.mulf %77, %73 : vector<8x128xf32>
    %cst_12 = arith.constant 0.199777111 : f32
    %79 = vector.broadcast %cst_12 : f32 to vector<8x128xf32>
    %80 = arith.addf %78, %79 : vector<8x128xf32>
    %81 = arith.mulf %80, %73 : vector<8x128xf32>
    %cst_13 = arith.constant 0.333329499 : f32
    %82 = vector.broadcast %cst_13 : f32 to vector<8x128xf32>
    %83 = arith.subf %81, %82 : vector<8x128xf32>
    %84 = arith.mulf %83, %73 : vector<8x128xf32>
    %85 = arith.mulf %84, %72 : vector<8x128xf32>
    %86 = arith.addf %85, %72 : vector<8x128xf32>
    %cst_14 = arith.constant 0.785398185 : f32
    %87 = vector.broadcast %cst_14 : f32 to vector<8x128xf32>
    %88 = arith.addf %86, %87 : vector<8x128xf32>
    %89 = arith.select %65, %88, %86 : vector<8x128xi1>, vector<8x128xf32>
    %90 = arith.cmpf ogt, %60, %59 : vector<8x128xf32>
    %cst_15 = arith.constant 1.57079637 : f32
    %91 = vector.broadcast %cst_15 : f32 to vector<8x128xf32>
    %92 = arith.subf %91, %89 : vector<8x128xf32>
    %93 = arith.select %90, %92, %89 : vector<8x128xi1>, vector<8x128xf32>
    %cst_16 = arith.constant 0.000000e+00 : f32
    %94 = vector.broadcast %cst_16 : f32 to vector<8x128xf32>
    %95 = arith.cmpf olt, %26, %94 : vector<8x128xf32>
    %cst_17 = arith.constant 3.14159274 : f32
    %96 = vector.broadcast %cst_17 : f32 to vector<8x128xf32>
    %97 = arith.subf %96, %93 : vector<8x128xf32>
    %98 = arith.select %95, %97, %93 : vector<8x128xi1>, vector<8x128xf32>
    %cst_18 = arith.constant 0.000000e+00 : f32
    %99 = vector.broadcast %cst_18 : f32 to vector<8x128xf32>
    %100 = arith.cmpf olt, %58, %99 : vector<8x128xf32>
    %cst_19 = arith.constant 0.000000e+00 : f32
    %101 = vector.broadcast %cst_19 : f32 to vector<8x128xf32>
    %102 = arith.subf %101, %98 : vector<8x128xf32>
    %103 = arith.select %100, %102, %98 : vector<8x128xi1>, vector<8x128xf32>
    %cst_20 = arith.constant 2.000000e+00 : f32
    %104 = vector.broadcast %cst_20 : f32 to vector<8x128xf32>
    %105 = arith.mulf %104, %103 : vector<8x128xf32>
    %cst_21 = arith.constant 0.159154937 : f32
    %106 = vector.broadcast %cst_21 : f32 to vector<8x128xf32>
    %107 = arith.mulf %105, %106 : vector<8x128xf32>
    %cst_22 = arith.constant 5.000000e-01 : f32
    %108 = vector.broadcast %cst_22 : f32 to vector<8x128xf32>
    %109 = arith.addf %107, %108 : vector<8x128xf32>
    %cst_23 = arith.constant 1.280000e+02 : f32
    %110 = vector.broadcast %cst_23 : f32 to vector<8x128xf32>
    %111 = arith.mulf %109, %110 : vector<8x128xf32>
    %112 = math.floor %111 : vector<8x128xf32>
    %113 = arith.fptosi %112 : vector<8x128xf32> to vector<8x128xi32>
    %c63_i32 = arith.constant 63 : i32
    %114 = vector.broadcast %c63_i32 : i32 to vector<8x128xi32>
    %115 = arith.andi %113, %114 : vector<8x128xi32>
    %116 = vector.extract_strided_slice %115 {offsets = [0, 0], sizes = [1, 128], strides = [1, 1]} : vector<8x128xi32> to vector<1x128xi32>
    %117 = vector.broadcast %116 : vector<1x128xi32> to vector<64x128xi32>
    %118 = arith.cmpi eq, %5, %117 : vector<64x128xi32>
    %119 = arith.extui %118 : vector<64x128xi1> to vector<64x128xi32>
    %120 = arith.sitofp %119 : vector<64x128xi32> to vector<64x128xf32>
    %cst_24 = arith.constant dense<0.000000e+00> : vector<8x128xf32>
    %121 = tpu.matmul %4, %120, %cst_24 {dimension_numbers = #tpu.dot_dimension_numbers<[1], [0], [0], [1], [0, 0, 1, 1], [], []>} : vector<8x64xf32>, vector<64x128xf32>, vector<8x128xf32> -> vector<8x128xf32>
    %122 = vector.extract_strided_slice %121 {offsets = [0, 0], sizes = [3, 128], strides = [1, 1]} : vector<8x128xf32> to vector<3x128xf32>
    %123 = vector.extract_strided_slice %57 {offsets = [0, 0], sizes = [1, 128], strides = [1, 1]} : vector<8x128xf32> to vector<1x128xf32>
    %124 = vector.broadcast %123 : vector<1x128xf32> to vector<3x128xf32>
    %125 = arith.mulf %122, %124 : vector<3x128xf32>
    %c0_i32_25 = arith.constant 0 : i32
    %126 = arith.addi %7, %c0_i32_25 : i32
    %127 = vector.extract_strided_slice %125 {offsets = [0, 0], sizes = [1, 128], strides = [1, 1]} : vector<3x128xf32> to vector<1x128xf32>
    %c0_26 = arith.constant 0 : index
    %128 = arith.index_cast %126 : i32 to index
    %c0_27 = arith.constant 0 : index
    %129 = vector.load %arg4[%c0_26, %128, %c0_27] : memref<3x8x128xf32, #tpu.memory_space<vmem>>, vector<1x1x128xf32>
    %130 = vector.shape_cast %129 : vector<1x1x128xf32> to vector<1x128xf32>
    %131 = vector.shape_cast %127 : vector<1x128xf32> to vector<1x1x128xf32>
    tpu.vector_store %arg4[%c0_26, %128, %c0_27], %131 {strides = array<i32>} : memref<3x8x128xf32, #tpu.memory_space<vmem>>, vector<1x1x128xf32>,
    %132 = vector.extract_strided_slice %125 {offsets = [1, 0], sizes = [1, 128], strides = [1, 1]} : vector<3x128xf32> to vector<1x128xf32>
    %c1_28 = arith.constant 1 : index
    %133 = arith.index_cast %126 : i32 to index
    %c0_29 = arith.constant 0 : index
    %134 = vector.load %arg4[%c1_28, %133, %c0_29] : memref<3x8x128xf32, #tpu.memory_space<vmem>>, vector<1x1x128xf32>
    %135 = vector.shape_cast %134 : vector<1x1x128xf32> to vector<1x128xf32>
    %136 = vector.shape_cast %132 : vector<1x128xf32> to vector<1x1x128xf32>
    tpu.vector_store %arg4[%c1_28, %133, %c0_29], %136 {strides = array<i32>} : memref<3x8x128xf32, #tpu.memory_space<vmem>>, vector<1x1x128xf32>,
    %137 = vector.extract_strided_slice %125 {offsets = [2, 0], sizes = [1, 128], strides = [1, 1]} : vector<3x128xf32> to vector<1x128xf32>
    %c2_30 = arith.constant 2 : index
    %138 = arith.index_cast %126 : i32 to index
    %c0_31 = arith.constant 0 : index
    %139 = vector.load %arg4[%c2_30, %138, %c0_31] : memref<3x8x128xf32, #tpu.memory_space<vmem>>, vector<1x1x128xf32>
    %140 = vector.shape_cast %139 : vector<1x1x128xf32> to vector<1x128xf32>
    %141 = vector.shape_cast %137 : vector<1x128xf32> to vector<1x1x128xf32>
    tpu.vector_store %arg4[%c2_30, %138, %c0_31], %141 {strides = array<i32>} : memref<3x8x128xf32, #tpu.memory_space<vmem>>, vector<1x1x128xf32>,
    %142 = vector.extract_strided_slice %115 {offsets = [1, 0], sizes = [1, 128], strides = [1, 1]} : vector<8x128xi32> to vector<1x128xi32>
    %143 = vector.broadcast %142 : vector<1x128xi32> to vector<64x128xi32>
    %144 = arith.cmpi eq, %5, %143 : vector<64x128xi32>
    %145 = arith.extui %144 : vector<64x128xi1> to vector<64x128xi32>
    %146 = arith.sitofp %145 : vector<64x128xi32> to vector<64x128xf32>
    %cst_32 = arith.constant dense<0.000000e+00> : vector<8x128xf32>
    %147 = tpu.matmul %4, %146, %cst_32 {dimension_numbers = #tpu.dot_dimension_numbers<[1], [0], [0], [1], [0, 0, 1, 1], [], []>} : vector<8x64xf32>, vector<64x128xf32>, vector<8x128xf32> -> vector<8x128xf32>
    %148 = vector.extract_strided_slice %147 {offsets = [0, 0], sizes = [3, 128], strides = [1, 1]} : vector<8x128xf32> to vector<3x128xf32>
    %149 = vector.extract_strided_slice %57 {offsets = [1, 0], sizes = [1, 128], strides = [1, 1]} : vector<8x128xf32> to vector<1x128xf32>
    %150 = vector.broadcast %149 : vector<1x128xf32> to vector<3x128xf32>
    %151 = arith.mulf %148, %150 : vector<3x128xf32>
    %c1_i32 = arith.constant 1 : i32
    %152 = arith.addi %7, %c1_i32 : i32
    %153 = vector.extract_strided_slice %151 {offsets = [0, 0], sizes = [1, 128], strides = [1, 1]} : vector<3x128xf32> to vector<1x128xf32>
    %c0_33 = arith.constant 0 : index
    %154 = arith.index_cast %152 : i32 to index
    %c0_34 = arith.constant 0 : index
    %155 = vector.load %arg4[%c0_33, %154, %c0_34] : memref<3x8x128xf32, #tpu.memory_space<vmem>>, vector<1x1x128xf32>
    %156 = vector.shape_cast %155 : vector<1x1x128xf32> to vector<1x128xf32>
    %157 = vector.shape_cast %153 : vector<1x128xf32> to vector<1x1x128xf32>
    tpu.vector_store %arg4[%c0_33, %154, %c0_34], %157 {strides = array<i32>} : memref<3x8x128xf32, #tpu.memory_space<vmem>>, vector<1x1x128xf32>,
    %158 = vector.extract_strided_slice %151 {offsets = [1, 0], sizes = [1, 128], strides = [1, 1]} : vector<3x128xf32> to vector<1x128xf32>
    %c1_35 = arith.constant 1 : index
    %159 = arith.index_cast %152 : i32 to index
    %c0_36 = arith.constant 0 : index
    %160 = vector.load %arg4[%c1_35, %159, %c0_36] : memref<3x8x128xf32, #tpu.memory_space<vmem>>, vector<1x1x128xf32>
    %161 = vector.shape_cast %160 : vector<1x1x128xf32> to vector<1x128xf32>
    %162 = vector.shape_cast %158 : vector<1x128xf32> to vector<1x1x128xf32>
    tpu.vector_store %arg4[%c1_35, %159, %c0_36], %162 {strides = array<i32>} : memref<3x8x128xf32, #tpu.memory_space<vmem>>, vector<1x1x128xf32>,
    %163 = vector.extract_strided_slice %151 {offsets = [2, 0], sizes = [1, 128], strides = [1, 1]} : vector<3x128xf32> to vector<1x128xf32>
    %c2_37 = arith.constant 2 : index
    %164 = arith.index_cast %152 : i32 to index
    %c0_38 = arith.constant 0 : index
    %165 = vector.load %arg4[%c2_37, %164, %c0_38] : memref<3x8x128xf32, #tpu.memory_space<vmem>>, vector<1x1x128xf32>
    %166 = vector.shape_cast %165 : vector<1x1x128xf32> to vector<1x128xf32>
    %167 = vector.shape_cast %163 : vector<1x128xf32> to vector<1x1x128xf32>
    tpu.vector_store %arg4[%c2_37, %164, %c0_38], %167 {strides = array<i32>} : memref<3x8x128xf32, #tpu.memory_space<vmem>>, vector<1x1x128xf32>,
    %168 = vector.extract_strided_slice %115 {offsets = [2, 0], sizes = [1, 128], strides = [1, 1]} : vector<8x128xi32> to vector<1x128xi32>
    %169 = vector.broadcast %168 : vector<1x128xi32> to vector<64x128xi32>
    %170 = arith.cmpi eq, %5, %169 : vector<64x128xi32>
    %171 = arith.extui %170 : vector<64x128xi1> to vector<64x128xi32>
    %172 = arith.sitofp %171 : vector<64x128xi32> to vector<64x128xf32>
    %cst_39 = arith.constant dense<0.000000e+00> : vector<8x128xf32>
    %173 = tpu.matmul %4, %172, %cst_39 {dimension_numbers = #tpu.dot_dimension_numbers<[1], [0], [0], [1], [0, 0, 1, 1], [], []>} : vector<8x64xf32>, vector<64x128xf32>, vector<8x128xf32> -> vector<8x128xf32>
    %174 = vector.extract_strided_slice %173 {offsets = [0, 0], sizes = [3, 128], strides = [1, 1]} : vector<8x128xf32> to vector<3x128xf32>
    %175 = vector.extract_strided_slice %57 {offsets = [2, 0], sizes = [1, 128], strides = [1, 1]} : vector<8x128xf32> to vector<1x128xf32>
    %176 = vector.broadcast %175 : vector<1x128xf32> to vector<3x128xf32>
    %177 = arith.mulf %174, %176 : vector<3x128xf32>
    %c2_i32 = arith.constant 2 : i32
    %178 = arith.addi %7, %c2_i32 : i32
    %179 = vector.extract_strided_slice %177 {offsets = [0, 0], sizes = [1, 128], strides = [1, 1]} : vector<3x128xf32> to vector<1x128xf32>
    %c0_40 = arith.constant 0 : index
    %180 = arith.index_cast %178 : i32 to index
    %c0_41 = arith.constant 0 : index
    %181 = vector.load %arg4[%c0_40, %180, %c0_41] : memref<3x8x128xf32, #tpu.memory_space<vmem>>, vector<1x1x128xf32>
    %182 = vector.shape_cast %181 : vector<1x1x128xf32> to vector<1x128xf32>
    %183 = vector.shape_cast %179 : vector<1x128xf32> to vector<1x1x128xf32>
    tpu.vector_store %arg4[%c0_40, %180, %c0_41], %183 {strides = array<i32>} : memref<3x8x128xf32, #tpu.memory_space<vmem>>, vector<1x1x128xf32>,
    %184 = vector.extract_strided_slice %177 {offsets = [1, 0], sizes = [1, 128], strides = [1, 1]} : vector<3x128xf32> to vector<1x128xf32>
    %c1_42 = arith.constant 1 : index
    %185 = arith.index_cast %178 : i32 to index
    %c0_43 = arith.constant 0 : index
    %186 = vector.load %arg4[%c1_42, %185, %c0_43] : memref<3x8x128xf32, #tpu.memory_space<vmem>>, vector<1x1x128xf32>
    %187 = vector.shape_cast %186 : vector<1x1x128xf32> to vector<1x128xf32>
    %188 = vector.shape_cast %184 : vector<1x128xf32> to vector<1x1x128xf32>
    tpu.vector_store %arg4[%c1_42, %185, %c0_43], %188 {strides = array<i32>} : memref<3x8x128xf32, #tpu.memory_space<vmem>>, vector<1x1x128xf32>,
    %189 = vector.extract_strided_slice %177 {offsets = [2, 0], sizes = [1, 128], strides = [1, 1]} : vector<3x128xf32> to vector<1x128xf32>
    %c2_44 = arith.constant 2 : index
    %190 = arith.index_cast %178 : i32 to index
    %c0_45 = arith.constant 0 : index
    %191 = vector.load %arg4[%c2_44, %190, %c0_45] : memref<3x8x128xf32, #tpu.memory_space<vmem>>, vector<1x1x128xf32>
    %192 = vector.shape_cast %191 : vector<1x1x128xf32> to vector<1x128xf32>
    %193 = vector.shape_cast %189 : vector<1x128xf32> to vector<1x1x128xf32>
    tpu.vector_store %arg4[%c2_44, %190, %c0_45], %193 {strides = array<i32>} : memref<3x8x128xf32, #tpu.memory_space<vmem>>, vector<1x1x128xf32>,
    %194 = vector.extract_strided_slice %115 {offsets = [3, 0], sizes = [1, 128], strides = [1, 1]} : vector<8x128xi32> to vector<1x128xi32>
    %195 = vector.broadcast %194 : vector<1x128xi32> to vector<64x128xi32>
    %196 = arith.cmpi eq, %5, %195 : vector<64x128xi32>
    %197 = arith.extui %196 : vector<64x128xi1> to vector<64x128xi32>
    %198 = arith.sitofp %197 : vector<64x128xi32> to vector<64x128xf32>
    %cst_46 = arith.constant dense<0.000000e+00> : vector<8x128xf32>
    %199 = tpu.matmul %4, %198, %cst_46 {dimension_numbers = #tpu.dot_dimension_numbers<[1], [0], [0], [1], [0, 0, 1, 1], [], []>} : vector<8x64xf32>, vector<64x128xf32>, vector<8x128xf32> -> vector<8x128xf32>
    %200 = vector.extract_strided_slice %199 {offsets = [0, 0], sizes = [3, 128], strides = [1, 1]} : vector<8x128xf32> to vector<3x128xf32>
    %201 = vector.extract_strided_slice %57 {offsets = [3, 0], sizes = [1, 128], strides = [1, 1]} : vector<8x128xf32> to vector<1x128xf32>
    %202 = vector.broadcast %201 : vector<1x128xf32> to vector<3x128xf32>
    %203 = arith.mulf %200, %202 : vector<3x128xf32>
    %c3_i32 = arith.constant 3 : i32
    %204 = arith.addi %7, %c3_i32 : i32
    %205 = vector.extract_strided_slice %203 {offsets = [0, 0], sizes = [1, 128], strides = [1, 1]} : vector<3x128xf32> to vector<1x128xf32>
    %c0_47 = arith.constant 0 : index
    %206 = arith.index_cast %204 : i32 to index
    %c0_48 = arith.constant 0 : index
    %207 = vector.load %arg4[%c0_47, %206, %c0_48] : memref<3x8x128xf32, #tpu.memory_space<vmem>>, vector<1x1x128xf32>
    %208 = vector.shape_cast %207 : vector<1x1x128xf32> to vector<1x128xf32>
    %209 = vector.shape_cast %205 : vector<1x128xf32> to vector<1x1x128xf32>
    tpu.vector_store %arg4[%c0_47, %206, %c0_48], %209 {strides = array<i32>} : memref<3x8x128xf32, #tpu.memory_space<vmem>>, vector<1x1x128xf32>,
    %210 = vector.extract_strided_slice %203 {offsets = [1, 0], sizes = [1, 128], strides = [1, 1]} : vector<3x128xf32> to vector<1x128xf32>
    %c1_49 = arith.constant 1 : index
    %211 = arith.index_cast %204 : i32 to index
    %c0_50 = arith.constant 0 : index
    %212 = vector.load %arg4[%c1_49, %211, %c0_50] : memref<3x8x128xf32, #tpu.memory_space<vmem>>, vector<1x1x128xf32>
    %213 = vector.shape_cast %212 : vector<1x1x128xf32> to vector<1x128xf32>
    %214 = vector.shape_cast %210 : vector<1x128xf32> to vector<1x1x128xf32>
    tpu.vector_store %arg4[%c1_49, %211, %c0_50], %214 {strides = array<i32>} : memref<3x8x128xf32, #tpu.memory_space<vmem>>, vector<1x1x128xf32>,
    %215 = vector.extract_strided_slice %203 {offsets = [2, 0], sizes = [1, 128], strides = [1, 1]} : vector<3x128xf32> to vector<1x128xf32>
    %c2_51 = arith.constant 2 : index
    %216 = arith.index_cast %204 : i32 to index
    %c0_52 = arith.constant 0 : index
    %217 = vector.load %arg4[%c2_51, %216, %c0_52] : memref<3x8x128xf32, #tpu.memory_space<vmem>>, vector<1x1x128xf32>
    %218 = vector.shape_cast %217 : vector<1x1x128xf32> to vector<1x128xf32>
    %219 = vector.shape_cast %215 : vector<1x128xf32> to vector<1x1x128xf32>
    tpu.vector_store %arg4[%c2_51, %216, %c0_52], %219 {strides = array<i32>} : memref<3x8x128xf32, #tpu.memory_space<vmem>>, vector<1x1x128xf32>,
    %220 = vector.extract_strided_slice %115 {offsets = [4, 0], sizes = [1, 128], strides = [1, 1]} : vector<8x128xi32> to vector<1x128xi32>
    %221 = vector.broadcast %220 : vector<1x128xi32> to vector<64x128xi32>
    %222 = arith.cmpi eq, %5, %221 : vector<64x128xi32>
    %223 = arith.extui %222 : vector<64x128xi1> to vector<64x128xi32>
    %224 = arith.sitofp %223 : vector<64x128xi32> to vector<64x128xf32>
    %cst_53 = arith.constant dense<0.000000e+00> : vector<8x128xf32>
    %225 = tpu.matmul %4, %224, %cst_53 {dimension_numbers = #tpu.dot_dimension_numbers<[1], [0], [0], [1], [0, 0, 1, 1], [], []>} : vector<8x64xf32>, vector<64x128xf32>, vector<8x128xf32> -> vector<8x128xf32>
    %226 = vector.extract_strided_slice %225 {offsets = [0, 0], sizes = [3, 128], strides = [1, 1]} : vector<8x128xf32> to vector<3x128xf32>
    %227 = vector.extract_strided_slice %57 {offsets = [4, 0], sizes = [1, 128], strides = [1, 1]} : vector<8x128xf32> to vector<1x128xf32>
    %228 = vector.broadcast %227 : vector<1x128xf32> to vector<3x128xf32>
    %229 = arith.mulf %226, %228 : vector<3x128xf32>
    %c4_i32 = arith.constant 4 : i32
    %230 = arith.addi %7, %c4_i32 : i32
    %231 = vector.extract_strided_slice %229 {offsets = [0, 0], sizes = [1, 128], strides = [1, 1]} : vector<3x128xf32> to vector<1x128xf32>
    %c0_54 = arith.constant 0 : index
    %232 = arith.index_cast %230 : i32 to index
    %c0_55 = arith.constant 0 : index
    %233 = vector.load %arg4[%c0_54, %232, %c0_55] : memref<3x8x128xf32, #tpu.memory_space<vmem>>, vector<1x1x128xf32>
    %234 = vector.shape_cast %233 : vector<1x1x128xf32> to vector<1x128xf32>
    %235 = vector.shape_cast %231 : vector<1x128xf32> to vector<1x1x128xf32>
    tpu.vector_store %arg4[%c0_54, %232, %c0_55], %235 {strides = array<i32>} : memref<3x8x128xf32, #tpu.memory_space<vmem>>, vector<1x1x128xf32>,
    %236 = vector.extract_strided_slice %229 {offsets = [1, 0], sizes = [1, 128], strides = [1, 1]} : vector<3x128xf32> to vector<1x128xf32>
    %c1_56 = arith.constant 1 : index
    %237 = arith.index_cast %230 : i32 to index
    %c0_57 = arith.constant 0 : index
    %238 = vector.load %arg4[%c1_56, %237, %c0_57] : memref<3x8x128xf32, #tpu.memory_space<vmem>>, vector<1x1x128xf32>
    %239 = vector.shape_cast %238 : vector<1x1x128xf32> to vector<1x128xf32>
    %240 = vector.shape_cast %236 : vector<1x128xf32> to vector<1x1x128xf32>
    tpu.vector_store %arg4[%c1_56, %237, %c0_57], %240 {strides = array<i32>} : memref<3x8x128xf32, #tpu.memory_space<vmem>>, vector<1x1x128xf32>,
    %241 = vector.extract_strided_slice %229 {offsets = [2, 0], sizes = [1, 128], strides = [1, 1]} : vector<3x128xf32> to vector<1x128xf32>
    %c2_58 = arith.constant 2 : index
    %242 = arith.index_cast %230 : i32 to index
    %c0_59 = arith.constant 0 : index
    %243 = vector.load %arg4[%c2_58, %242, %c0_59] : memref<3x8x128xf32, #tpu.memory_space<vmem>>, vector<1x1x128xf32>
    %244 = vector.shape_cast %243 : vector<1x1x128xf32> to vector<1x128xf32>
    %245 = vector.shape_cast %241 : vector<1x128xf32> to vector<1x1x128xf32>
    tpu.vector_store %arg4[%c2_58, %242, %c0_59], %245 {strides = array<i32>} : memref<3x8x128xf32, #tpu.memory_space<vmem>>, vector<1x1x128xf32>,
    %246 = vector.extract_strided_slice %115 {offsets = [5, 0], sizes = [1, 128], strides = [1, 1]} : vector<8x128xi32> to vector<1x128xi32>
    %247 = vector.broadcast %246 : vector<1x128xi32> to vector<64x128xi32>
    %248 = arith.cmpi eq, %5, %247 : vector<64x128xi32>
    %249 = arith.extui %248 : vector<64x128xi1> to vector<64x128xi32>
    %250 = arith.sitofp %249 : vector<64x128xi32> to vector<64x128xf32>
    %cst_60 = arith.constant dense<0.000000e+00> : vector<8x128xf32>
    %251 = tpu.matmul %4, %250, %cst_60 {dimension_numbers = #tpu.dot_dimension_numbers<[1], [0], [0], [1], [0, 0, 1, 1], [], []>} : vector<8x64xf32>, vector<64x128xf32>, vector<8x128xf32> -> vector<8x128xf32>
    %252 = vector.extract_strided_slice %251 {offsets = [0, 0], sizes = [3, 128], strides = [1, 1]} : vector<8x128xf32> to vector<3x128xf32>
    %253 = vector.extract_strided_slice %57 {offsets = [5, 0], sizes = [1, 128], strides = [1, 1]} : vector<8x128xf32> to vector<1x128xf32>
    %254 = vector.broadcast %253 : vector<1x128xf32> to vector<3x128xf32>
    %255 = arith.mulf %252, %254 : vector<3x128xf32>
    %c5_i32 = arith.constant 5 : i32
    %256 = arith.addi %7, %c5_i32 : i32
    %257 = vector.extract_strided_slice %255 {offsets = [0, 0], sizes = [1, 128], strides = [1, 1]} : vector<3x128xf32> to vector<1x128xf32>
    %c0_61 = arith.constant 0 : index
    %258 = arith.index_cast %256 : i32 to index
    %c0_62 = arith.constant 0 : index
    %259 = vector.load %arg4[%c0_61, %258, %c0_62] : memref<3x8x128xf32, #tpu.memory_space<vmem>>, vector<1x1x128xf32>
    %260 = vector.shape_cast %259 : vector<1x1x128xf32> to vector<1x128xf32>
    %261 = vector.shape_cast %257 : vector<1x128xf32> to vector<1x1x128xf32>
    tpu.vector_store %arg4[%c0_61, %258, %c0_62], %261 {strides = array<i32>} : memref<3x8x128xf32, #tpu.memory_space<vmem>>, vector<1x1x128xf32>,
    %262 = vector.extract_strided_slice %255 {offsets = [1, 0], sizes = [1, 128], strides = [1, 1]} : vector<3x128xf32> to vector<1x128xf32>
    %c1_63 = arith.constant 1 : index
    %263 = arith.index_cast %256 : i32 to index
    %c0_64 = arith.constant 0 : index
    %264 = vector.load %arg4[%c1_63, %263, %c0_64] : memref<3x8x128xf32, #tpu.memory_space<vmem>>, vector<1x1x128xf32>
    %265 = vector.shape_cast %264 : vector<1x1x128xf32> to vector<1x128xf32>
    %266 = vector.shape_cast %262 : vector<1x128xf32> to vector<1x1x128xf32>
    tpu.vector_store %arg4[%c1_63, %263, %c0_64], %266 {strides = array<i32>} : memref<3x8x128xf32, #tpu.memory_space<vmem>>, vector<1x1x128xf32>,
    %267 = vector.extract_strided_slice %255 {offsets = [2, 0], sizes = [1, 128], strides = [1, 1]} : vector<3x128xf32> to vector<1x128xf32>
    %c2_65 = arith.constant 2 : index
    %268 = arith.index_cast %256 : i32 to index
    %c0_66 = arith.constant 0 : index
    %269 = vector.load %arg4[%c2_65, %268, %c0_66] : memref<3x8x128xf32, #tpu.memory_space<vmem>>, vector<1x1x128xf32>
    %270 = vector.shape_cast %269 : vector<1x1x128xf32> to vector<1x128xf32>
    %271 = vector.shape_cast %267 : vector<1x128xf32> to vector<1x1x128xf32>
    tpu.vector_store %arg4[%c2_65, %268, %c0_66], %271 {strides = array<i32>} : memref<3x8x128xf32, #tpu.memory_space<vmem>>, vector<1x1x128xf32>,
    %272 = vector.extract_strided_slice %115 {offsets = [6, 0], sizes = [1, 128], strides = [1, 1]} : vector<8x128xi32> to vector<1x128xi32>
    %273 = vector.broadcast %272 : vector<1x128xi32> to vector<64x128xi32>
    %274 = arith.cmpi eq, %5, %273 : vector<64x128xi32>
    %275 = arith.extui %274 : vector<64x128xi1> to vector<64x128xi32>
    %276 = arith.sitofp %275 : vector<64x128xi32> to vector<64x128xf32>
    %cst_67 = arith.constant dense<0.000000e+00> : vector<8x128xf32>
    %277 = tpu.matmul %4, %276, %cst_67 {dimension_numbers = #tpu.dot_dimension_numbers<[1], [0], [0], [1], [0, 0, 1, 1], [], []>} : vector<8x64xf32>, vector<64x128xf32>, vector<8x128xf32> -> vector<8x128xf32>
    %278 = vector.extract_strided_slice %277 {offsets = [0, 0], sizes = [3, 128], strides = [1, 1]} : vector<8x128xf32> to vector<3x128xf32>
    %279 = vector.extract_strided_slice %57 {offsets = [6, 0], sizes = [1, 128], strides = [1, 1]} : vector<8x128xf32> to vector<1x128xf32>
    %280 = vector.broadcast %279 : vector<1x128xf32> to vector<3x128xf32>
    %281 = arith.mulf %278, %280 : vector<3x128xf32>
    %c6_i32 = arith.constant 6 : i32
    %282 = arith.addi %7, %c6_i32 : i32
    %283 = vector.extract_strided_slice %281 {offsets = [0, 0], sizes = [1, 128], strides = [1, 1]} : vector<3x128xf32> to vector<1x128xf32>
    %c0_68 = arith.constant 0 : index
    %284 = arith.index_cast %282 : i32 to index
    %c0_69 = arith.constant 0 : index
    %285 = vector.load %arg4[%c0_68, %284, %c0_69] : memref<3x8x128xf32, #tpu.memory_space<vmem>>, vector<1x1x128xf32>
    %286 = vector.shape_cast %285 : vector<1x1x128xf32> to vector<1x128xf32>
    %287 = vector.shape_cast %283 : vector<1x128xf32> to vector<1x1x128xf32>
    tpu.vector_store %arg4[%c0_68, %284, %c0_69], %287 {strides = array<i32>} : memref<3x8x128xf32, #tpu.memory_space<vmem>>, vector<1x1x128xf32>,
    %288 = vector.extract_strided_slice %281 {offsets = [1, 0], sizes = [1, 128], strides = [1, 1]} : vector<3x128xf32> to vector<1x128xf32>
    %c1_70 = arith.constant 1 : index
    %289 = arith.index_cast %282 : i32 to index
    %c0_71 = arith.constant 0 : index
    %290 = vector.load %arg4[%c1_70, %289, %c0_71] : memref<3x8x128xf32, #tpu.memory_space<vmem>>, vector<1x1x128xf32>
    %291 = vector.shape_cast %290 : vector<1x1x128xf32> to vector<1x128xf32>
    %292 = vector.shape_cast %288 : vector<1x128xf32> to vector<1x1x128xf32>
    tpu.vector_store %arg4[%c1_70, %289, %c0_71], %292 {strides = array<i32>} : memref<3x8x128xf32, #tpu.memory_space<vmem>>, vector<1x1x128xf32>,
    %293 = vector.extract_strided_slice %281 {offsets = [2, 0], sizes = [1, 128], strides = [1, 1]} : vector<3x128xf32> to vector<1x128xf32>
    %c2_72 = arith.constant 2 : index
    %294 = arith.index_cast %282 : i32 to index
    %c0_73 = arith.constant 0 : index
    %295 = vector.load %arg4[%c2_72, %294, %c0_73] : memref<3x8x128xf32, #tpu.memory_space<vmem>>, vector<1x1x128xf32>
    %296 = vector.shape_cast %295 : vector<1x1x128xf32> to vector<1x128xf32>
    %297 = vector.shape_cast %293 : vector<1x128xf32> to vector<1x1x128xf32>
    tpu.vector_store %arg4[%c2_72, %294, %c0_73], %297 {strides = array<i32>} : memref<3x8x128xf32, #tpu.memory_space<vmem>>, vector<1x1x128xf32>,
    %298 = vector.extract_strided_slice %115 {offsets = [7, 0], sizes = [1, 128], strides = [1, 1]} : vector<8x128xi32> to vector<1x128xi32>
    %299 = vector.broadcast %298 : vector<1x128xi32> to vector<64x128xi32>
    %300 = arith.cmpi eq, %5, %299 : vector<64x128xi32>
    %301 = arith.extui %300 : vector<64x128xi1> to vector<64x128xi32>
    %302 = arith.sitofp %301 : vector<64x128xi32> to vector<64x128xf32>
    %cst_74 = arith.constant dense<0.000000e+00> : vector<8x128xf32>
    %303 = tpu.matmul %4, %302, %cst_74 {dimension_numbers = #tpu.dot_dimension_numbers<[1], [0], [0], [1], [0, 0, 1, 1], [], []>} : vector<8x64xf32>, vector<64x128xf32>, vector<8x128xf32> -> vector<8x128xf32>
    %304 = vector.extract_strided_slice %303 {offsets = [0, 0], sizes = [3, 128], strides = [1, 1]} : vector<8x128xf32> to vector<3x128xf32>
    %305 = vector.extract_strided_slice %57 {offsets = [7, 0], sizes = [1, 128], strides = [1, 1]} : vector<8x128xf32> to vector<1x128xf32>
    %306 = vector.broadcast %305 : vector<1x128xf32> to vector<3x128xf32>
    %307 = arith.mulf %304, %306 : vector<3x128xf32>
    %c7_i32 = arith.constant 7 : i32
    %308 = arith.addi %7, %c7_i32 : i32
    %309 = vector.extract_strided_slice %307 {offsets = [0, 0], sizes = [1, 128], strides = [1, 1]} : vector<3x128xf32> to vector<1x128xf32>
    %c0_75 = arith.constant 0 : index
    %310 = arith.index_cast %308 : i32 to index
    %c0_76 = arith.constant 0 : index
    %311 = vector.load %arg4[%c0_75, %310, %c0_76] : memref<3x8x128xf32, #tpu.memory_space<vmem>>, vector<1x1x128xf32>
    %312 = vector.shape_cast %311 : vector<1x1x128xf32> to vector<1x128xf32>
    %313 = vector.shape_cast %309 : vector<1x128xf32> to vector<1x1x128xf32>
    tpu.vector_store %arg4[%c0_75, %310, %c0_76], %313 {strides = array<i32>} : memref<3x8x128xf32, #tpu.memory_space<vmem>>, vector<1x1x128xf32>,
    %314 = vector.extract_strided_slice %307 {offsets = [1, 0], sizes = [1, 128], strides = [1, 1]} : vector<3x128xf32> to vector<1x128xf32>
    %c1_77 = arith.constant 1 : index
    %315 = arith.index_cast %308 : i32 to index
    %c0_78 = arith.constant 0 : index
    %316 = vector.load %arg4[%c1_77, %315, %c0_78] : memref<3x8x128xf32, #tpu.memory_space<vmem>>, vector<1x1x128xf32>
    %317 = vector.shape_cast %316 : vector<1x1x128xf32> to vector<1x128xf32>
    %318 = vector.shape_cast %314 : vector<1x128xf32> to vector<1x1x128xf32>
    tpu.vector_store %arg4[%c1_77, %315, %c0_78], %318 {strides = array<i32>} : memref<3x8x128xf32, #tpu.memory_space<vmem>>, vector<1x1x128xf32>,
    %319 = vector.extract_strided_slice %307 {offsets = [2, 0], sizes = [1, 128], strides = [1, 1]} : vector<3x128xf32> to vector<1x128xf32>
    %c2_79 = arith.constant 2 : index
    %320 = arith.index_cast %308 : i32 to index
    %c0_80 = arith.constant 0 : index
    %321 = vector.load %arg4[%c2_79, %320, %c0_80] : memref<3x8x128xf32, #tpu.memory_space<vmem>>, vector<1x1x128xf32>
    %322 = vector.shape_cast %321 : vector<1x1x128xf32> to vector<1x128xf32>
    %323 = vector.shape_cast %319 : vector<1x128xf32> to vector<1x1x128xf32>
    tpu.vector_store %arg4[%c2_79, %320, %c0_80], %323 {strides = array<i32>} : memref<3x8x128xf32, #tpu.memory_space<vmem>>, vector<1x1x128xf32>,
    %c1_i32_81 = arith.constant 1 : i32
    return
  }
  func.func @transform_0(%arg0: i32) -> i32 {
    %c0_i32 = arith.constant 0 : i32
    %c0_i32_0 = arith.constant 0 : i32
    return %c0_i32 : i32
  }
  func.func @transform_1(%arg0: i32) -> (i32, i32) {
    %c0_i32 = arith.constant 0 : i32
    %c0_i32_0 = arith.constant 0 : i32
    %c0_i32_1 = arith.constant 0 : i32
    return %c0_i32, %c0_i32_0 : i32, i32
  }
  func.func @transform_2(%arg0: i32) -> (i32, i32, i32) {
    %c0_i32 = arith.constant 0 : i32
    %c0_i32_0 = arith.constant 0 : i32
    %c0_i32_1 = arith.constant 0 : i32
    return %c0_i32, %arg0, %c0_i32_0 : i32, i32, i32
  }
  func.func @transform_3(%arg0: i32) -> (i32, i32, i32) {
    %c0_i32 = arith.constant 0 : i32
    %c0_i32_0 = arith.constant 0 : i32
    %c0_i32_1 = arith.constant 0 : i32
    return %c0_i32, %arg0, %c0_i32_0 : i32, i32, i32
  }
}

</mosaic_0001>

<llo_original>
// kernel: tpu_custom_call.1
$region0: #{tpu_custom_call.1}
  #allocation0 [shape = 'u32[]', space=smem, size = 0x4, offset = 0x4, fixed_abs, tag = 'smem constant byte address 0x4 - core index']
  #allocation1 [shape = 'u32[144,128]{1,0:T(1,128)}', space=vmem, size = 0x12000, scoped, tag = 'internal scratch']
  %s0 = inlined_call_operand.hbm [shape: f32[4], index: 0, kind: input, shape index: {}]
  %s1 = inlined_call_operand.hbm [shape: f32[8,64], index: 1, kind: input, shape index: {}]
  %s2 = inlined_call_operand.hbm [shape: f32[3,8,128], index: 2, kind: input, shape index: {}]
  %s3 = inlined_call_operand.hbm [shape: f32[3,8,128], index: 3, kind: output, shape index: {}]
  %s4 = sld [smem:[#allocation0]]
  $region34: #{tpu_custom_call.1} parent=0
    _
  %s6 = ssub.s32 1, %s4
  %s7 = scalar_select 0, %s6, %s4
  $region1: #{tpu_custom_call.1} parent=0
    #allocation2 [shape = 'u8[512]{0}', space=smem, size = 0x200, scoped, tag = 'input window, operand 0, single buffered']
    #allocation3 [shape = 's32[1]{0}', space=sflag, size = 0x4, scoped, tag = 'scoped memory for tpu_custom_call.1']
    #allocation4 [shape = 's32[1]{0}', space=sflag, size = 0x4, scoped, tag = 'scoped memory for tpu_custom_call.1']
    #allocation5 [shape = 's32[1]{0}', space=sflag, size = 0x4, scoped, tag = 'scoped memory for tpu_custom_call.1']
    #allocation6 [shape = 'u8[4096]{0}', space=vmem, size = 0x1000, scoped, tag = 'input window, operand 1, single buffered']
    #allocation7 [shape = 'u8[12288]{0}', space=vmem, size = 0x3000, scoped, tag = 'input window, operand 2, single buffered']
    #allocation8 [shape = 's32[1]{0}', space=sflag, size = 0x4, scoped, tag = 'scoped memory for tpu_custom_call.1']
    #allocation9 [shape = 'u8[12288]{0}', space=vmem, size = 0x3000, scoped, tag = 'output window, operand 0, single buffered']
    %8 = vsyncpa [#allocation5], 0
    %9 = vsyncpa [#allocation3], 0
    %10 = vsyncpa [#allocation8], 0
    %11 = vsyncpa [#allocation4], 0
    // Predicated region
    $region2: #{tpu_custom_call.1} parent=1 // pred_check
      _
    $region3: #{tpu_custom_call.1} parent=1 // pred_check_branch
      %13 = sbr.rel (0) target = $region5
    $region4: #{tpu_custom_call.1} parent=1 // pred_region
      %s15 = ssub.s32 16, 16
      %16 = vsyncadd [#allocation5], %s15
      %19 = dma.hbm_to_smem %s0, 16, [#allocation2], [#allocation5]
    $region5: #{tpu_custom_call.1} parent=1 // pred_fallthru
      _
    // Predicated region
    $region6: #{tpu_custom_call.1} parent=1 // pred_check
      _
    $region7: #{tpu_custom_call.1} parent=1 // pred_check_branch
      %21 = sbr.rel (0) target = $region9
    $region8: #{tpu_custom_call.1} parent=1 // pred_region
      %s23 = ssub.s32 128, 128
      %24 = vsyncadd [#allocation3], %s23
      %s26 = sshll.u32 [#allocation6], 4
      %s27 = int_to_ptr.vmem [resolvable:$true] %s26
      %29 = dma.hbm_to_vmem [thread:$0]  %s1, 128, %s27, [#allocation3]
    $region9: #{tpu_custom_call.1} parent=1 // pred_fallthru
      _
    // Predicated region
    $region10: #{tpu_custom_call.1} parent=1 // pred_check
      _
    $region11: #{tpu_custom_call.1} parent=1 // pred_check_branch
      %31 = sbr.rel (0) target = $region13
    $region12: #{tpu_custom_call.1} parent=1 // pred_region
      %s33 = ssub.s32 384, 384
      %34 = vsyncadd [#allocation8], %s33
      %s35 = sshll.u32 [#allocation7], 4
      %s36 = int_to_ptr.vmem [resolvable:$true] %s35
      %41 = dma.hbm_to_vmem [thread:$0]  %s2, 384, %s36, [#allocation8], 128, 128, 8
    $region13: #{tpu_custom_call.1} parent=1 // pred_fallthru
      _
    // Predicated region
    $region14: #{tpu_custom_call.1} parent=1 // pred_check
      _
    $region15: #{tpu_custom_call.1} parent=1 // pred_check_branch
      %43 = sbr.rel (0) target = $region17
    $region16: #{tpu_custom_call.1} parent=1 // pred_region
      %44 = dma.done [#allocation5], 16
    $region17: #{tpu_custom_call.1} parent=1 // pred_fallthru
      _
    // Predicated region
    $region18: #{tpu_custom_call.1} parent=1 // pred_check
      _
    $region19: #{tpu_custom_call.1} parent=1 // pred_check_branch
      %46 = sbr.rel (0) target = $region21
    $region20: #{tpu_custom_call.1} parent=1 // pred_region
      %47 = dma.done [#allocation3], 128
    $region21: #{tpu_custom_call.1} parent=1 // pred_fallthru
      _
    // Predicated region
    $region22: #{tpu_custom_call.1} parent=1 // pred_check
      _
    $region23: #{tpu_custom_call.1} parent=1 // pred_check_branch
      %49 = sbr.rel (0) target = $region25
    $region24: #{tpu_custom_call.1} parent=1 // pred_region
      %50 = dma.done [#allocation8], 384
    $region25: #{tpu_custom_call.1} parent=1 // pred_fallthru
      _
    %51 = sfence
    %s52 = sld [smem:[#allocation2]]
    %s53 = sld [smem:[#allocation2 + $0x1]]
    %s54 = sld [smem:[#allocation2 + $0x2]]
    %s55 = sld [smem:[#allocation2 + $0x3]]
    %v56 = vld [vmem:[#allocation6] sm:$0xff]
    %v57 = vlaneseq
    %v58 = vshrl.u32 %v57, 7
    %v59 = vadd.s32 %v58, 8
    %v60 = vadd.s32 %v58, 16
    %v61 = vadd.s32 %v58, 24
    %v62 = vadd.s32 %v58, 32
    %v63 = vadd.s32 %v58, 40
    %v64 = vadd.s32 %v58, 48
    %v65 = vadd.s32 %v58, 56
    %v66 = vld [vmem:[#allocation7] sm:$0xff]
    %s67 = sadd.s32 0, 8
    %s68 = scalar_lea.vmem [#allocation7], %s67
    %v69 = vld [vmem:[%s68] sm:$0xff]
    %s70 = sadd.s32 0, 16
    %s71 = scalar_lea.vmem [#allocation7], %s70
    %v72 = vld [vmem:[%s71] sm:$0xff]
    %v73 = vstv %s53
    %v74 = vmul.f32 %v66, %v73
    %v75 = vstv %s54
    %v76 = vmul.f32 %v69, %v75
    %v77 = vadd.f32 %v74, %v76
    %v78 = vstv %s55
    %v79 = vmul.f32 %v72, %v78
    %v80 = vadd.f32 %v77, %v79
    %v81 = vsub.f32 0.0, %v80
    %v82 = vstv %s52
    %v83 = vmul.f32 %v66, %v82
    %v84 = vmul.f32 %v69, %v78
    %v85 = vadd.f32 %v83, %v84
    %v86 = vmul.f32 %v72, %v75
    %v87 = vsub.f32 %v85, %v86
    %v88 = vmul.f32 %v69, %v82
    %v89 = vmul.f32 %v72, %v73
    %v90 = vadd.f32 %v88, %v89
    %v91 = vmul.f32 %v66, %v78
    %v92 = vsub.f32 %v90, %v91
    %v93 = vmul.f32 %v72, %v82
    %v94 = vmul.f32 %v66, %v75
    %v95 = vadd.f32 %v93, %v94
    %v96 = vmul.f32 %v69, %v73
    %v97 = vsub.f32 %v95, %v96
    %v98 = vmul.f32 %v87, %v87
    %v99 = vmul.f32 %v92, %v92
    %v100 = vadd.f32 %v98, %v99
    %v101 = vmul.f32 %v97, %v97
    %v102 = vadd.f32 %v100, %v101
    %v103 = vmul.f32 %v81, %v81
    %v104 = vadd.f32 %v103, %v102
    %v105 = vrsqrt.pop %v102
    %v106 = vmul.f32 %v102, %v105
    %vm107 = vcmp.eq.f32.partialorder %v102, inf
    %v108 = vsel %vm107, %v102, %v106
    %vm109 = vcmp.eq.f32.partialorder %v102, 0.0
    %v110 = vand.u32 %v102, 2147483648
    %v111 = vsel %vm109, %v110, %v108
    %v112 = vand.u32 2147483647, %v81
    %v113 = vand.u32 2147483647, %v111
    %v114 = vmax.f32 %v112, %v113
    %v115 = vmin.f32 %v112, %v113
    %v116 = vmul.f32 %v114, 0.41421357
    %vm117 = vcmp.gt.f32.partialorder %v115, %v116
    %v118 = vsub.f32 %v115, %v114
    %v119 = vsel %vm117, %v118, %v115
    %v120 = vadd.f32 %v115, %v114
    %v121 = vsel %vm117, %v120, %v114
    %v122 = vmax.f32 %v121, 1e-30
    %v123 = vrcp.pop %v122
    %v124 = vmul.f32 %v119, %v123
    %v125 = vmul.f32 %v124, %v124
    %v126 = vmul.f32 %v125, 0.080537446
    %v127 = vsub.f32 %v126, 0.13877685
    %v128 = vmul.f32 %v127, %v125
    %v129 = vadd.f32 %v128, 0.19977711
    %v130 = vmul.f32 %v129, %v125
    %v131 = vsub.f32 %v130, 0.3333295
    %v132 = vmul.f32 %v131, %v125
    %v133 = vmul.f32 %v132, %v124
    %v134 = vadd.f32 %v133, %v124
    %v135 = vadd.f32 %v134, 0.7853982
    %v136 = vsel %vm117, %v135, %v134
    %vm137 = vcmp.gt.f32.partialorder %v113, %v112
    %v138 = vsub.f32 1.5707964, %v136
    %v139 = vsel %vm137, %v138, %v136
    %vm140 = vcmp.lt.f32.partialorder %v81, 0.0
    %v141 = vsub.f32 3.1415927, %v139
    %v142 = vsel %vm140, %v141, %v139
    %vm143 = vcmp.lt.f32.partialorder %v111, 0.0
    %v144 = vsub.f32 0.0, %v142
    %v145 = vsel %vm143, %v144, %v142
    %v146 = vmul.f32 %v145, 2.0
    %v147 = vmul.f32 %v146, 0.15915494
    %v148 = vadd.f32 %v147, 0.5
    %v149 = vmul.f32 %v148, 128.0
    %v150 = vfloor.f32 %v149
    %v151 = vcvt.f32.s32.to.zero.pseudo %v150
    %v152 = vand.u32 %v151, 63
    %v153 = vlaneseq
    %v154 = vshrl.u32 %v153, 7
    %v155 = vsub.s32 0, %v154
    %v156 = vrot.slane %v152, %v155
    %vm157 = vcmp.eq.s32.totalorder %v58, %v156
    %vm158 = vcmp.eq.s32.totalorder %v59, %v156
    %vm159 = vcmp.eq.s32.totalorder %v60, %v156
    %vm160 = vcmp.eq.s32.totalorder %v61, %v156
    %vm161 = vcmp.eq.s32.totalorder %v62, %v156
    %vm162 = vcmp.eq.s32.totalorder %v63, %v156
    %vm163 = vcmp.eq.s32.totalorder %v64, %v156
    %vm164 = vcmp.eq.s32.totalorder %v65, %v156
    %v165 = vsel %vm157, 1, 0
    %v166 = vsel %vm158, 1, 0
    %v167 = vsel %vm159, 1, 0
    %v168 = vsel %vm160, 1, 0
    %v169 = vsel %vm161, 1, 0
    %v170 = vsel %vm162, 1, 0
    %v171 = vsel %vm163, 1, 0
    %v172 = vsel %vm164, 1, 0
    %v173 = vcvt.s32.f32 %v165
    %v174 = vcvt.s32.f32 %v166
    %v175 = vcvt.s32.f32 %v167
    %v176 = vcvt.s32.f32 %v168
    %v177 = vcvt.s32.f32 %v169
    %v178 = vcvt.s32.f32 %v170
    %v179 = vcvt.s32.f32 %v171
    %v180 = vcvt.s32.f32 %v172
    %vm181 = vcmask 523264
    %v183 = vsel %vm181, %v56, 0
    %185 = vmatprep.subr.mxu0 0.0
    %186 = vmatpush1.msra.mxu0 %v173
    %187 = vmatprep.subr.mxu0 0.0
    %188 = vmatpush1.msra.mxu0 %v174
    %189 = vmatprep.subr.mxu0 0.0
    %190 = vmatpush1.msra.mxu0 %v175
    %191 = vmatprep.subr.mxu0 0.0
    %192 = vmatpush1.msra.mxu0 %v176
    %193 = vmatprep.subr.mxu0 0.0
    %194 = vmatpush1.msra.mxu0 %v177
    %195 = vmatprep.subr.mxu0 0.0
    %196 = vmatpush1.msra.mxu0 %v178
    %197 = vmatprep.subr.mxu0 0.0
    %198 = vmatpush1.msra.mxu0 %v179
    %199 = vmatprep.subr.mxu0 0.0
    %200 = vmatpush1.msra.mxu0 %v180
    %201 = vmatprep.subr.mxu0 0.0
    %202 = vmatpush1.msra.mxu0 0.0
    %203 = vmatprep.subr.mxu0 0.0
    %204 = vmatpush1.msra.mxu0 0.0
    %205 = vmatprep.subr.mxu0 0.0
    %206 = vmatpush1.msra.mxu0 0.0
    %207 = vmatprep.subr.mxu0 0.0
    %208 = vmatpush1.msra.mxu0 0.0
    %209 = vmatprep.subr.mxu0 0.0
    %210 = vmatpush1.msra.mxu0 0.0
    %211 = vmatprep.subr.mxu0 0.0
    %212 = vmatpush1.msra.mxu0 0.0
    %213 = vmatprep.subr.mxu0 0.0
    %214 = vmatpush1.msra.mxu0 0.0
    %215 = vmatprep.subr.mxu0 0.0
    %216 = vmatpush1.msra.mxu0 0.0
    %217 = vmatprep.subr.mxu0 0.0
    %218 = vmatpush1.msra.mxu0 0.0
    %219 = vmatprep.subr.mxu0 0.0
    %220 = vmatpush1.msra.mxu0 0.0
    %221 = vmatprep.subr.mxu0 0.0
    %222 = vmatpush1.msra.mxu0 0.0
    %223 = vmatprep.subr.mxu0 0.0
    %224 = vmatpush1.msra.mxu0 0.0
    %225 = vmatprep.subr.mxu0 0.0
    %226 = vmatpush1.msra.mxu0 0.0
    %227 = vmatprep.subr.mxu0 0.0
    %228 = vmatpush1.msra.mxu0 0.0
    %229 = vmatprep.subr.mxu0 0.0
    %230 = vmatpush1.msra.mxu0 0.0
    %231 = vmatprep.subr.mxu0 0.0
    %232 = vmatpush1.msra.mxu0 0.0
    %233 = vmatprep.subr.mxu0 0.0
    %234 = vmatpush1.msra.mxu0 0.0
    %235 = vmatprep.subr.mxu0 0.0
    %236 = vmatpush1.msra.mxu0 0.0
    %237 = vmatprep.subr.mxu0 0.0
    %238 = vmatpush1.msra.mxu0 0.0
    %239 = vmatprep.subr.mxu0 0.0
    %240 = vmatpush1.msra.mxu0 0.0
    %241 = vmatprep.subr.mxu0 0.0
    %242 = vmatpush1.msra.mxu0 0.0
    %243 = vmatprep.subr.mxu0 0.0
    %244 = vmatpush1.msra.mxu0 0.0
    %245 = vmatprep.subr.mxu0 0.0
    %246 = vmatpush1.msra.mxu0 0.0
    %247 = vmatprep.subr.mxu0 0.0
    %248 = vmatpush1.msra.mxu0 0.0
    %249 = vmatprep.mubr.f32.mxu0 0.0
    %250 = vmatmul.mubr.f32.gmra.mrb[0].mxu0 %v183
    %v251 = vpop.f32.mrb[0].mxu0
    %v252 = vadd.f32 0.0, %v251
    %v253 = vpop.f32.mrb[0].mxu0
    %254 = vdwg.mxu0
    %v255 = vlaneseq
    %v256 = vshrl.u32 %v255, 7
    %v257 = vsub.s32 0, %v256
    %v258 = vrot.slane %v104, %v257
    %v259 = vmul.f32 %v252, %v258
    %260 = vst [vmem:[#allocation9] sm:$0x1] %v259
    %s261 = scalar_lea.vmem [#allocation9], %s67
    %262 = vst [vmem:[%s261 - $0x1] sm:$0x2] %v259
    %s263 = scalar_lea.vmem [#allocation9], %s70
    %264 = vst [vmem:[%s263 - $0x2] sm:$0x4] %v259
    %v265 = vlaneseq
    %v266 = vshrl.u32 %v265, 7
    %v267 = vsub.s32 1, %v266
    %v268 = vrot.slane %v152, %v267
    %vm269 = vcmp.eq.s32.totalorder %v58, %v268
    %vm270 = vcmp.eq.s32.totalorder %v59, %v268
    %vm271 = vcmp.eq.s32.totalorder %v60, %v268
    %vm272 = vcmp.eq.s32.totalorder %v61, %v268
    %vm273 = vcmp.eq.s32.totalorder %v62, %v268
    %vm274 = vcmp.eq.s32.totalorder %v63, %v268
    %vm275 = vcmp.eq.s32.totalorder %v64, %v268
    %vm276 = vcmp.eq.s32.totalorder %v65, %v268
    %v277 = vsel %vm269, 1, 0
    %v278 = vsel %vm270, 1, 0
    %v279 = vsel %vm271, 1, 0
    %v280 = vsel %vm272, 1, 0
    %v281 = vsel %vm273, 1, 0
    %v282 = vsel %vm274, 1, 0
    %v283 = vsel %vm275, 1, 0
    %v284 = vsel %vm276, 1, 0
    %v285 = vcvt.s32.f32 %v277
    %v286 = vcvt.s32.f32 %v278
    %v287 = vcvt.s32.f32 %v279
    %v288 = vcvt.s32.f32 %v280
    %v289 = vcvt.s32.f32 %v281
    %v290 = vcvt.s32.f32 %v282
    %v291 = vcvt.s32.f32 %v283
    %v292 = vcvt.s32.f32 %v284
    %293 = vmatprep.subr.mxu0 0.0
    %294 = vmatpush1.msra.mxu0 %v285
    %295 = vmatprep.subr.mxu0 0.0
    %296 = vmatpush1.msra.mxu0 %v286
    %297 = vmatprep.subr.mxu0 0.0
    %298 = vmatpush1.msra.mxu0 %v287
    %299 = vmatprep.subr.mxu0 0.0
    %300 = vmatpush1.msra.mxu0 %v288
    %301 = vmatprep.subr.mxu0 0.0
    %302 = vmatpush1.msra.mxu0 %v289
    %303 = vmatprep.subr.mxu0 0.0
    %304 = vmatpush1.msra.mxu0 %v290
    %305 = vmatprep.subr.mxu0 0.0
    %306 = vmatpush1.msra.mxu0 %v291
    %307 = vmatprep.subr.mxu0 0.0
    %308 = vmatpush1.msra.mxu0 %v292
    %309 = vmatprep.subr.mxu0 0.0
    %310 = vmatpush1.msra.mxu0 0.0
    %311 = vmatprep.subr.mxu0 0.0
    %312 = vmatpush1.msra.mxu0 0.0
    %313 = vmatprep.subr.mxu0 0.0
    %314 = vmatpush1.msra.mxu0 0.0
    %315 = vmatprep.subr.mxu0 0.0
    %316 = vmatpush1.msra.mxu0 0.0
    %317 = vmatprep.subr.mxu0 0.0
    %318 = vmatpush1.msra.mxu0 0.0
    %319 = vmatprep.subr.mxu0 0.0
    %320 = vmatpush1.msra.mxu0 0.0
    %321 = vmatprep.subr.mxu0 0.0
    %322 = vmatpush1.msra.mxu0 0.0
    %323 = vmatprep.subr.mxu0 0.0
    %324 = vmatpush1.msra.mxu0 0.0
    %325 = vmatprep.subr.mxu0 0.0
    %326 = vmatpush1.msra.mxu0 0.0
    %327 = vmatprep.subr.mxu0 0.0
    %328 = vmatpush1.msra.mxu0 0.0
    %329 = vmatprep.subr.mxu0 0.0
    %330 = vmatpush1.msra.mxu0 0.0
    %331 = vmatprep.subr.mxu0 0.0
    %332 = vmatpush1.msra.mxu0 0.0
    %333 = vmatprep.subr.mxu0 0.0
    %334 = vmatpush1.msra.mxu0 0.0
    %335 = vmatprep.subr.mxu0 0.0
    %336 = vmatpush1.msra.mxu0 0.0
    %337 = vmatprep.subr.mxu0 0.0
    %338 = vmatpush1.msra.mxu0 0.0
    %339 = vmatprep.subr.mxu0 0.0
    %340 = vmatpush1.msra.mxu0 0.0
    %341 = vmatprep.subr.mxu0 0.0
    %342 = vmatpush1.msra.mxu0 0.0
    %343 = vmatprep.subr.mxu0 0.0
    %344 = vmatpush1.msra.mxu0 0.0
    %345 = vmatprep.subr.mxu0 0.0
    %346 = vmatpush1.msra.mxu0 0.0
    %347 = vmatprep.subr.mxu0 0.0
    %348 = vmatpush1.msra.mxu0 0.0
    %349 = vmatprep.subr.mxu0 0.0
    %350 = vmatpush1.msra.mxu0 0.0
    %351 = vmatprep.subr.mxu0 0.0
    %352 = vmatpush1.msra.mxu0 0.0
    %353 = vmatprep.subr.mxu0 0.0
    %354 = vmatpush1.msra.mxu0 0.0
    %355 = vmatprep.subr.mxu0 0.0
    %356 = vmatpush1.msra.mxu0 0.0
    %357 = vmatprep.mubr.f32.mxu0 0.0
    %358 = vmatmul.mubr.f32.gmra.mrb[0].mxu0 %v183
    %v359 = vpop.f32.mrb[0].mxu0
    %v360 = vadd.f32 0.0, %v359
    %v361 = vpop.f32.mrb[0].mxu0
    %362 = vdwg.mxu0
    %v363 = vlaneseq
    %v364 = vshrl.u32 %v363, 7
    %v365 = vsub.s32 1, %v364
    %v366 = vrot.slane %v104, %v365
    %v367 = vmul.f32 %v360, %v366
    %s368 = sadd.s32 0, 1
    %s369 = scalar_lea.vmem [#allocation9], %s368
    %370 = vst [vmem:[%s369] sm:$0x1] %v367
    %s371 = sadd.s32 %s368, 8
    %s372 = scalar_lea.vmem [#allocation9], %s371
    %373 = vst [vmem:[%s372 - $0x1] sm:$0x2] %v367
    %s374 = sadd.s32 %s368, 16
    %s375 = scalar_lea.vmem [#allocation9], %s374
    %376 = vst [vmem:[%s375 - $0x2] sm:$0x4] %v367
    %v377 = vlaneseq
    %v378 = vshrl.u32 %v377, 7
    %v379 = vsub.s32 2, %v378
    %v380 = vrot.slane %v152, %v379
    %vm381 = vcmp.eq.s32.totalorder %v58, %v380
    %vm382 = vcmp.eq.s32.totalorder %v59, %v380
    %vm383 = vcmp.eq.s32.totalorder %v60, %v380
    %vm384 = vcmp.eq.s32.totalorder %v61, %v380
    %vm385 = vcmp.eq.s32.totalorder %v62, %v380
    %vm386 = vcmp.eq.s32.totalorder %v63, %v380
    %vm387 = vcmp.eq.s32.totalorder %v64, %v380
    %vm388 = vcmp.eq.s32.totalorder %v65, %v380
    %v389 = vsel %vm381, 1, 0
    %v390 = vsel %vm382, 1, 0
    %v391 = vsel %vm383, 1, 0
    %v392 = vsel %vm384, 1, 0
    %v393 = vsel %vm385, 1, 0
    %v394 = vsel %vm386, 1, 0
    %v395 = vsel %vm387, 1, 0
    %v396 = vsel %vm388, 1, 0
    %v397 = vcvt.s32.f32 %v389
    %v398 = vcvt.s32.f32 %v390
    %v399 = vcvt.s32.f32 %v391
    %v400 = vcvt.s32.f32 %v392
    %v401 = vcvt.s32.f32 %v393
    %v402 = vcvt.s32.f32 %v394
    %v403 = vcvt.s32.f32 %v395
    %v404 = vcvt.s32.f32 %v396
    %405 = vmatprep.subr.mxu0 0.0
    %406 = vmatpush1.msra.mxu0 %v397
    %407 = vmatprep.subr.mxu0 0.0
    %408 = vmatpush1.msra.mxu0 %v398
    %409 = vmatprep.subr.mxu0 0.0
    %410 = vmatpush1.msra.mxu0 %v399
    %411 = vmatprep.subr.mxu0 0.0
    %412 = vmatpush1.msra.mxu0 %v400
    %413 = vmatprep.subr.mxu0 0.0
    %414 = vmatpush1.msra.mxu0 %v401
    %415 = vmatprep.subr.mxu0 0.0
    %416 = vmatpush1.msra.mxu0 %v402
    %417 = vmatprep.subr.mxu0 0.0
    %418 = vmatpush1.msra.mxu0 %v403
    %419 = vmatprep.subr.mxu0 0.0
    %420 = vmatpush1.msra.mxu0 %v404
    %421 = vmatprep.subr.mxu0 0.0
    %422 = vmatpush1.msra.mxu0 0.0
    %423 = vmatprep.subr.mxu0 0.0
    %424 = vmatpush1.msra.mxu0 0.0
    %425 = vmatprep.subr.mxu0 0.0
    %426 = vmatpush1.msra.mxu0 0.0
    %427 = vmatprep.subr.mxu0 0.0
    %428 = vmatpush1.msra.mxu0 0.0
    %429 = vmatprep.subr.mxu0 0.0
    %430 = vmatpush1.msra.mxu0 0.0
    %431 = vmatprep.subr.mxu0 0.0
    %432 = vmatpush1.msra.mxu0 0.0
    %433 = vmatprep.subr.mxu0 0.0
    %434 = vmatpush1.msra.mxu0 0.0
    %435 = vmatprep.subr.mxu0 0.0
    %436 = vmatpush1.msra.mxu0 0.0
    %437 = vmatprep.subr.mxu0 0.0
    %438 = vmatpush1.msra.mxu0 0.0
    %439 = vmatprep.subr.mxu0 0.0
    %440 = vmatpush1.msra.mxu0 0.0
    %441 = vmatprep.subr.mxu0 0.0
    %442 = vmatpush1.msra.mxu0 0.0
    %443 = vmatprep.subr.mxu0 0.0
    %444 = vmatpush1.msra.mxu0 0.0
    %445 = vmatprep.subr.mxu0 0.0
    %446 = vmatpush1.msra.mxu0 0.0
    %447 = vmatprep.subr.mxu0 0.0
    %448 = vmatpush1.msra.mxu0 0.0
    %449 = vmatprep.subr.mxu0 0.0
    %450 = vmatpush1.msra.mxu0 0.0
    %451 = vmatprep.subr.mxu0 0.0
    %452 = vmatpush1.msra.mxu0 0.0
    %453 = vmatprep.subr.mxu0 0.0
    %454 = vmatpush1.msra.mxu0 0.0
    %455 = vmatprep.subr.mxu0 0.0
    %456 = vmatpush1.msra.mxu0 0.0
    %457 = vmatprep.subr.mxu0 0.0
    %458 = vmatpush1.msra.mxu0 0.0
    %459 = vmatprep.subr.mxu0 0.0
    %460 = vmatpush1.msra.mxu0 0.0
    %461 = vmatprep.subr.mxu0 0.0
    %462 = vmatpush1.msra.mxu0 0.0
    %463 = vmatprep.subr.mxu0 0.0
    %464 = vmatpush1.msra.mxu0 0.0
    %465 = vmatprep.subr.mxu0 0.0
    %466 = vmatpush1.msra.mxu0 0.0
    %467 = vmatprep.subr.mxu0 0.0
    %468 = vmatpush1.msra.mxu0 0.0
    %469 = vmatprep.mubr.f32.mxu0 0.0
    %470 = vmatmul.mubr.f32.gmra.mrb[0].mxu0 %v183
    %v471 = vpop.f32.mrb[0].mxu0
    %v472 = vadd.f32 0.0, %v471
    %v473 = vpop.f32.mrb[0].mxu0
    %474 = vdwg.mxu0
    %v475 = vlaneseq
    %v476 = vshrl.u32 %v475, 7
    %v477 = vsub.s32 2, %v476
    %v478 = vrot.slane %v104, %v477
    %v479 = vmul.f32 %v472, %v478
    %s480 = sadd.s32 0, 2
    %s481 = scalar_lea.vmem [#allocation9], %s480
    %482 = vst [vmem:[%s481] sm:$0x1] %v479
    %s483 = sadd.s32 %s480, 8
    %s484 = scalar_lea.vmem [#allocation9], %s483
    %485 = vst [vmem:[%s484 - $0x1] sm:$0x2] %v479
    %s486 = sadd.s32 %s480, 16
    %s487 = scalar_lea.vmem [#allocation9], %s486
    %488 = vst [vmem:[%s487 - $0x2] sm:$0x4] %v479
    %v489 = vlaneseq
    %v490 = vshrl.u32 %v489, 7
    %v491 = vsub.s32 3, %v490
    %v492 = vrot.slane %v152, %v491
    %vm493 = vcmp.eq.s32.totalorder %v58, %v492
    %vm494 = vcmp.eq.s32.totalorder %v59, %v492
    %vm495 = vcmp.eq.s32.totalorder %v60, %v492
    %vm496 = vcmp.eq.s32.totalorder %v61, %v492
    %vm497 = vcmp.eq.s32.totalorder %v62, %v492
    %vm498 = vcmp.eq.s32.totalorder %v63, %v492
    %vm499 = vcmp.eq.s32.totalorder %v64, %v492
    %vm500 = vcmp.eq.s32.totalorder %v65, %v492
    %v501 = vsel %vm493, 1, 0
    %v502 = vsel %vm494, 1, 0
    %v503 = vsel %vm495, 1, 0
    %v504 = vsel %vm496, 1, 0
    %v505 = vsel %vm497, 1, 0
    %v506 = vsel %vm498, 1, 0
    %v507 = vsel %vm499, 1, 0
    %v508 = vsel %vm500, 1, 0
    %v509 = vcvt.s32.f32 %v501
    %v510 = vcvt.s32.f32 %v502
    %v511 = vcvt.s32.f32 %v503
    %v512 = vcvt.s32.f32 %v504
    %v513 = vcvt.s32.f32 %v505
    %v514 = vcvt.s32.f32 %v506
    %v515 = vcvt.s32.f32 %v507
    %v516 = vcvt.s32.f32 %v508
    %517 = vmatprep.subr.mxu0 0.0
    %518 = vmatpush1.msra.mxu0 %v509
    %519 = vmatprep.subr.mxu0 0.0
    %520 = vmatpush1.msra.mxu0 %v510
    %521 = vmatprep.subr.mxu0 0.0
    %522 = vmatpush1.msra.mxu0 %v511
    %523 = vmatprep.subr.mxu0 0.0
    %524 = vmatpush1.msra.mxu0 %v512
    %525 = vmatprep.subr.mxu0 0.0
    %526 = vmatpush1.msra.mxu0 %v513
    %527 = vmatprep.subr.mxu0 0.0
    %528 = vmatpush1.msra.mxu0 %v514
    %529 = vmatprep.subr.mxu0 0.0
    %530 = vmatpush1.msra.mxu0 %v515
    %531 = vmatprep.subr.mxu0 0.0
    %532 = vmatpush1.msra.mxu0 %v516
    %533 = vmatprep.subr.mxu0 0.0
    %534 = vmatpush1.msra.mxu0 0.0
    %535 = vmatprep.subr.mxu0 0.0
    %536 = vmatpush1.msra.mxu0 0.0
    %537 = vmatprep.subr.mxu0 0.0
    %538 = vmatpush1.msra.mxu0 0.0
    %539 = vmatprep.subr.mxu0 0.0
    %540 = vmatpush1.msra.mxu0 0.0
    %541 = vmatprep.subr.mxu0 0.0
    %542 = vmatpush1.msra.mxu0 0.0
    %543 = vmatprep.subr.mxu0 0.0
    %544 = vmatpush1.msra.mxu0 0.0
    %545 = vmatprep.subr.mxu0 0.0
    %546 = vmatpush1.msra.mxu0 0.0
    %547 = vmatprep.subr.mxu0 0.0
    %548 = vmatpush1.msra.mxu0 0.0
    %549 = vmatprep.subr.mxu0 0.0
    %550 = vmatpush1.msra.mxu0 0.0
    %551 = vmatprep.subr.mxu0 0.0
    %552 = vmatpush1.msra.mxu0 0.0
    %553 = vmatprep.subr.mxu0 0.0
    %554 = vmatpush1.msra.mxu0 0.0
    %555 = vmatprep.subr.mxu0 0.0
    %556 = vmatpush1.msra.mxu0 0.0
    %557 = vmatprep.subr.mxu0 0.0
    %558 = vmatpush1.msra.mxu0 0.0
    %559 = vmatprep.subr.mxu0 0.0
    %560 = vmatpush1.msra.mxu0 0.0
    %561 = vmatprep.subr.mxu0 0.0
    %562 = vmatpush1.msra.mxu0 0.0
    %563 = vmatprep.subr.mxu0 0.0
    %564 = vmatpush1.msra.mxu0 0.0
    %565 = vmatprep.subr.mxu0 0.0
    %566 = vmatpush1.msra.mxu0 0.0
    %567 = vmatprep.subr.mxu0 0.0
    %568 = vmatpush1.msra.mxu0 0.0
    %569 = vmatprep.subr.mxu0 0.0
    %570 = vmatpush1.msra.mxu0 0.0
    %571 = vmatprep.subr.mxu0 0.0
    %572 = vmatpush1.msra.mxu0 0.0
    %573 = vmatprep.subr.mxu0 0.0
    %574 = vmatpush1.msra.mxu0 0.0
    %575 = vmatprep.subr.mxu0 0.0
    %576 = vmatpush1.msra.mxu0 0.0
    %577 = vmatprep.subr.mxu0 0.0
    %578 = vmatpush1.msra.mxu0 0.0
    %579 = vmatprep.subr.mxu0 0.0
    %580 = vmatpush1.msra.mxu0 0.0
    %581 = vmatprep.mubr.f32.mxu0 0.0
    %582 = vmatmul.mubr.f32.gmra.mrb[0].mxu0 %v183
    %v583 = vpop.f32.mrb[0].mxu0
    %v584 = vadd.f32 0.0, %v583
    %v585 = vpop.f32.mrb[0].mxu0
    %586 = vdwg.mxu0
    %v587 = vlaneseq
    %v588 = vshrl.u32 %v587, 7
    %v589 = vsub.s32 3, %v588
    %v590 = vrot.slane %v104, %v589
    %v591 = vmul.f32 %v584, %v590
    %s592 = sadd.s32 0, 3
    %s593 = scalar_lea.vmem [#allocation9], %s592
    %594 = vst [vmem:[%s593] sm:$0x1] %v591
    %s595 = sadd.s32 %s592, 8
    %s596 = scalar_lea.vmem [#allocation9], %s595
    %597 = vst [vmem:[%s596 - $0x1] sm:$0x2] %v591
    %s598 = sadd.s32 %s592, 16
    %s599 = scalar_lea.vmem [#allocation9], %s598
    %600 = vst [vmem:[%s599 - $0x2] sm:$0x4] %v591
    %v601 = vlaneseq
    %v602 = vshrl.u32 %v601, 7
    %v603 = vsub.s32 4, %v602
    %v604 = vrot.slane %v152, %v603
    %vm605 = vcmp.eq.s32.totalorder %v58, %v604
    %vm606 = vcmp.eq.s32.totalorder %v59, %v604
    %vm607 = vcmp.eq.s32.totalorder %v60, %v604
    %vm608 = vcmp.eq.s32.totalorder %v61, %v604
    %vm609 = vcmp.eq.s32.totalorder %v62, %v604
    %vm610 = vcmp.eq.s32.totalorder %v63, %v604
    %vm611 = vcmp.eq.s32.totalorder %v64, %v604
    %vm612 = vcmp.eq.s32.totalorder %v65, %v604
    %v613 = vsel %vm605, 1, 0
    %v614 = vsel %vm606, 1, 0
    %v615 = vsel %vm607, 1, 0
    %v616 = vsel %vm608, 1, 0
    %v617 = vsel %vm609, 1, 0
    %v618 = vsel %vm610, 1, 0
    %v619 = vsel %vm611, 1, 0
    %v620 = vsel %vm612, 1, 0
    %v621 = vcvt.s32.f32 %v613
    %v622 = vcvt.s32.f32 %v614
    %v623 = vcvt.s32.f32 %v615
    %v624 = vcvt.s32.f32 %v616
    %v625 = vcvt.s32.f32 %v617
    %v626 = vcvt.s32.f32 %v618
    %v627 = vcvt.s32.f32 %v619
    %v628 = vcvt.s32.f32 %v620
    %629 = vmatprep.subr.mxu0 0.0
    %630 = vmatpush1.msra.mxu0 %v621
    %631 = vmatprep.subr.mxu0 0.0
    %632 = vmatpush1.msra.mxu0 %v622
    %633 = vmatprep.subr.mxu0 0.0
    %634 = vmatpush1.msra.mxu0 %v623
    %635 = vmatprep.subr.mxu0 0.0
    %636 = vmatpush1.msra.mxu0 %v624
    %637 = vmatprep.subr.mxu0 0.0
    %638 = vmatpush1.msra.mxu0 %v625
    %639 = vmatprep.subr.mxu0 0.0
    %640 = vmatpush1.msra.mxu0 %v626
    %641 = vmatprep.subr.mxu0 0.0
    %642 = vmatpush1.msra.mxu0 %v627
    %643 = vmatprep.subr.mxu0 0.0
    %644 = vmatpush1.msra.mxu0 %v628
    %645 = vmatprep.subr.mxu0 0.0
    %646 = vmatpush1.msra.mxu0 0.0
    %647 = vmatprep.subr.mxu0 0.0
    %648 = vmatpush1.msra.mxu0 0.0
    %649 = vmatprep.subr.mxu0 0.0
    %650 = vmatpush1.msra.mxu0 0.0
    %651 = vmatprep.subr.mxu0 0.0
    %652 = vmatpush1.msra.mxu0 0.0
    %653 = vmatprep.subr.mxu0 0.0
    %654 = vmatpush1.msra.mxu0 0.0
    %655 = vmatprep.subr.mxu0 0.0
    %656 = vmatpush1.msra.mxu0 0.0
    %657 = vmatprep.subr.mxu0 0.0
    %658 = vmatpush1.msra.mxu0 0.0
    %659 = vmatprep.subr.mxu0 0.0
    %660 = vmatpush1.msra.mxu0 0.0
    %661 = vmatprep.subr.mxu0 0.0
    %662 = vmatpush1.msra.mxu0 0.0
    %663 = vmatprep.subr.mxu0 0.0
    %664 = vmatpush1.msra.mxu0 0.0
    %665 = vmatprep.subr.mxu0 0.0
    %666 = vmatpush1.msra.mxu0 0.0
    %667 = vmatprep.subr.mxu0 0.0
    %668 = vmatpush1.msra.mxu0 0.0
    %669 = vmatprep.subr.mxu0 0.0
    %670 = vmatpush1.msra.mxu0 0.0
    %671 = vmatprep.subr.mxu0 0.0
    %672 = vmatpush1.msra.mxu0 0.0
    %673 = vmatprep.subr.mxu0 0.0
    %674 = vmatpush1.msra.mxu0 0.0
    %675 = vmatprep.subr.mxu0 0.0
    %676 = vmatpush1.msra.mxu0 0.0
    %677 = vmatprep.subr.mxu0 0.0
    %678 = vmatpush1.msra.mxu0 0.0
    %679 = vmatprep.subr.mxu0 0.0
    %680 = vmatpush1.msra.mxu0 0.0
    %681 = vmatprep.subr.mxu0 0.0
    %682 = vmatpush1.msra.mxu0 0.0
    %683 = vmatprep.subr.mxu0 0.0
    %684 = vmatpush1.msra.mxu0 0.0
    %685 = vmatprep.subr.mxu0 0.0
    %686 = vmatpush1.msra.mxu0 0.0
    %687 = vmatprep.subr.mxu0 0.0
    %688 = vmatpush1.msra.mxu0 0.0
    %689 = vmatprep.subr.mxu0 0.0
    %690 = vmatpush1.msra.mxu0 0.0
    %691 = vmatprep.subr.mxu0 0.0
    %692 = vmatpush1.msra.mxu0 0.0
    %693 = vmatprep.mubr.f32.mxu0 0.0
    %694 = vmatmul.mubr.f32.gmra.mrb[0].mxu0 %v183
    %v695 = vpop.f32.mrb[0].mxu0
    %v696 = vadd.f32 0.0, %v695
    %v697 = vpop.f32.mrb[0].mxu0
    %698 = vdwg.mxu0
    %v699 = vlaneseq
    %v700 = vshrl.u32 %v699, 7
    %v701 = vsub.s32 4, %v700
    %v702 = vrot.slane %v104, %v701
    %v703 = vmul.f32 %v696, %v702
    %s704 = sadd.s32 0, 4
    %s705 = scalar_lea.vmem [#allocation9], %s704
    %706 = vst [vmem:[%s705] sm:$0x1] %v703
    %s707 = sadd.s32 %s704, 8
    %s708 = scalar_lea.vmem [#allocation9], %s707
    %709 = vst [vmem:[%s708 - $0x1] sm:$0x2] %v703
    %s710 = sadd.s32 %s704, 16
    %s711 = scalar_lea.vmem [#allocation9], %s710
    %712 = vst [vmem:[%s711 - $0x2] sm:$0x4] %v703
    %v713 = vlaneseq
    %v714 = vshrl.u32 %v713, 7
    %v715 = vsub.s32 5, %v714
    %v716 = vrot.slane %v152, %v715
    %vm717 = vcmp.eq.s32.totalorder %v58, %v716
    %vm718 = vcmp.eq.s32.totalorder %v59, %v716
    %vm719 = vcmp.eq.s32.totalorder %v60, %v716
    %vm720 = vcmp.eq.s32.totalorder %v61, %v716
    %vm721 = vcmp.eq.s32.totalorder %v62, %v716
    %vm722 = vcmp.eq.s32.totalorder %v63, %v716
    %vm723 = vcmp.eq.s32.totalorder %v64, %v716
    %vm724 = vcmp.eq.s32.totalorder %v65, %v716
    %v725 = vsel %vm717, 1, 0
    %v726 = vsel %vm718, 1, 0
    %v727 = vsel %vm719, 1, 0
    %v728 = vsel %vm720, 1, 0
    %v729 = vsel %vm721, 1, 0
    %v730 = vsel %vm722, 1, 0
    %v731 = vsel %vm723, 1, 0
    %v732 = vsel %vm724, 1, 0
    %v733 = vcvt.s32.f32 %v725
    %v734 = vcvt.s32.f32 %v726
    %v735 = vcvt.s32.f32 %v727
    %v736 = vcvt.s32.f32 %v728
    %v737 = vcvt.s32.f32 %v729
    %v738 = vcvt.s32.f32 %v730
    %v739 = vcvt.s32.f32 %v731
    %v740 = vcvt.s32.f32 %v732
    %741 = vmatprep.subr.mxu0 0.0
    %742 = vmatpush1.msra.mxu0 %v733
    %743 = vmatprep.subr.mxu0 0.0
    %744 = vmatpush1.msra.mxu0 %v734
    %745 = vmatprep.subr.mxu0 0.0
    %746 = vmatpush1.msra.mxu0 %v735
    %747 = vmatprep.subr.mxu0 0.0
    %748 = vmatpush1.msra.mxu0 %v736
    %749 = vmatprep.subr.mxu0 0.0
    %750 = vmatpush1.msra.mxu0 %v737
    %751 = vmatprep.subr.mxu0 0.0
    %752 = vmatpush1.msra.mxu0 %v738
    %753 = vmatprep.subr.mxu0 0.0
    %754 = vmatpush1.msra.mxu0 %v739
    %755 = vmatprep.subr.mxu0 0.0
    %756 = vmatpush1.msra.mxu0 %v740
    %757 = vmatprep.subr.mxu0 0.0
    %758 = vmatpush1.msra.mxu0 0.0
    %759 = vmatprep.subr.mxu0 0.0
    %760 = vmatpush1.msra.mxu0 0.0
    %761 = vmatprep.subr.mxu0 0.0
    %762 = vmatpush1.msra.mxu0 0.0
    %763 = vmatprep.subr.mxu0 0.0
    %764 = vmatpush1.msra.mxu0 0.0
    %765 = vmatprep.subr.mxu0 0.0
    %766 = vmatpush1.msra.mxu0 0.0
    %767 = vmatprep.subr.mxu0 0.0
    %768 = vmatpush1.msra.mxu0 0.0
    %769 = vmatprep.subr.mxu0 0.0
    %770 = vmatpush1.msra.mxu0 0.0
    %771 = vmatprep.subr.mxu0 0.0
    %772 = vmatpush1.msra.mxu0 0.0
    %773 = vmatprep.subr.mxu0 0.0
    %774 = vmatpush1.msra.mxu0 0.0
    %775 = vmatprep.subr.mxu0 0.0
    %776 = vmatpush1.msra.mxu0 0.0
    %777 = vmatprep.subr.mxu0 0.0
    %778 = vmatpush1.msra.mxu0 0.0
    %779 = vmatprep.subr.mxu0 0.0
    %780 = vmatpush1.msra.mxu0 0.0
    %781 = vmatprep.subr.mxu0 0.0
    %782 = vmatpush1.msra.mxu0 0.0
    %783 = vmatprep.subr.mxu0 0.0
    %784 = vmatpush1.msra.mxu0 0.0
    %785 = vmatprep.subr.mxu0 0.0
    %786 = vmatpush1.msra.mxu0 0.0
    %787 = vmatprep.subr.mxu0 0.0
    %788 = vmatpush1.msra.mxu0 0.0
    %789 = vmatprep.subr.mxu0 0.0
    %790 = vmatpush1.msra.mxu0 0.0
    %791 = vmatprep.subr.mxu0 0.0
    %792 = vmatpush1.msra.mxu0 0.0
    %793 = vmatprep.subr.mxu0 0.0
    %794 = vmatpush1.msra.mxu0 0.0
    %795 = vmatprep.subr.mxu0 0.0
    %796 = vmatpush1.msra.mxu0 0.0
    %797 = vmatprep.subr.mxu0 0.0
    %798 = vmatpush1.msra.mxu0 0.0
    %799 = vmatprep.subr.mxu0 0.0
    %800 = vmatpush1.msra.mxu0 0.0
    %801 = vmatprep.subr.mxu0 0.0
    %802 = vmatpush1.msra.mxu0 0.0
    %803 = vmatprep.subr.mxu0 0.0
    %804 = vmatpush1.msra.mxu0 0.0
    %805 = vmatprep.mubr.f32.mxu0 0.0
    %806 = vmatmul.mubr.f32.gmra.mrb[0].mxu0 %v183
    %v807 = vpop.f32.mrb[0].mxu0
    %v808 = vadd.f32 0.0, %v807
    %v809 = vpop.f32.mrb[0].mxu0
    %810 = vdwg.mxu0
    %v811 = vlaneseq
    %v812 = vshrl.u32 %v811, 7
    %v813 = vsub.s32 5, %v812
    %v814 = vrot.slane %v104, %v813
    %v815 = vmul.f32 %v808, %v814
    %s816 = sadd.s32 0, 5
    %s817 = scalar_lea.vmem [#allocation9], %s816
    %818 = vst [vmem:[%s817] sm:$0x1] %v815
    %s819 = sadd.s32 %s816, 8
    %s820 = scalar_lea.vmem [#allocation9], %s819
    %821 = vst [vmem:[%s820 - $0x1] sm:$0x2] %v815
    %s822 = sadd.s32 %s816, 16
    %s823 = scalar_lea.vmem [#allocation9], %s822
    %824 = vst [vmem:[%s823 - $0x2] sm:$0x4] %v815
    %v825 = vlaneseq
    %v826 = vshrl.u32 %v825, 7
    %v827 = vsub.s32 6, %v826
    %v828 = vrot.slane %v152, %v827
    %vm829 = vcmp.eq.s32.totalorder %v58, %v828
    %vm830 = vcmp.eq.s32.totalorder %v59, %v828
    %vm831 = vcmp.eq.s32.totalorder %v60, %v828
    %vm832 = vcmp.eq.s32.totalorder %v61, %v828
    %vm833 = vcmp.eq.s32.totalorder %v62, %v828
    %vm834 = vcmp.eq.s32.totalorder %v63, %v828
    %vm835 = vcmp.eq.s32.totalorder %v64, %v828
    %vm836 = vcmp.eq.s32.totalorder %v65, %v828
    %v837 = vsel %vm829, 1, 0
    %v838 = vsel %vm830, 1, 0
    %v839 = vsel %vm831, 1, 0
    %v840 = vsel %vm832, 1, 0
    %v841 = vsel %vm833, 1, 0
    %v842 = vsel %vm834, 1, 0
    %v843 = vsel %vm835, 1, 0
    %v844 = vsel %vm836, 1, 0
    %v845 = vcvt.s32.f32 %v837
    %v846 = vcvt.s32.f32 %v838
    %v847 = vcvt.s32.f32 %v839
    %v848 = vcvt.s32.f32 %v840
    %v849 = vcvt.s32.f32 %v841
    %v850 = vcvt.s32.f32 %v842
    %v851 = vcvt.s32.f32 %v843
    %v852 = vcvt.s32.f32 %v844
    %853 = vmatprep.subr.mxu0 0.0
    %854 = vmatpush1.msra.mxu0 %v845
    %855 = vmatprep.subr.mxu0 0.0
    %856 = vmatpush1.msra.mxu0 %v846
    %857 = vmatprep.subr.mxu0 0.0
    %858 = vmatpush1.msra.mxu0 %v847
    %859 = vmatprep.subr.mxu0 0.0
    %860 = vmatpush1.msra.mxu0 %v848
    %861 = vmatprep.subr.mxu0 0.0
    %862 = vmatpush1.msra.mxu0 %v849
    %863 = vmatprep.subr.mxu0 0.0
    %864 = vmatpush1.msra.mxu0 %v850
    %865 = vmatprep.subr.mxu0 0.0
    %866 = vmatpush1.msra.mxu0 %v851
    %867 = vmatprep.subr.mxu0 0.0
    %868 = vmatpush1.msra.mxu0 %v852
    %869 = vmatprep.subr.mxu0 0.0
    %870 = vmatpush1.msra.mxu0 0.0
    %871 = vmatprep.subr.mxu0 0.0
    %872 = vmatpush1.msra.mxu0 0.0
    %873 = vmatprep.subr.mxu0 0.0
    %874 = vmatpush1.msra.mxu0 0.0
    %875 = vmatprep.subr.mxu0 0.0
    %876 = vmatpush1.msra.mxu0 0.0
    %877 = vmatprep.subr.mxu0 0.0
    %878 = vmatpush1.msra.mxu0 0.0
    %879 = vmatprep.subr.mxu0 0.0
    %880 = vmatpush1.msra.mxu0 0.0
    %881 = vmatprep.subr.mxu0 0.0
    %882 = vmatpush1.msra.mxu0 0.0
    %883 = vmatprep.subr.mxu0 0.0
    %884 = vmatpush1.msra.mxu0 0.0
    %885 = vmatprep.subr.mxu0 0.0
    %886 = vmatpush1.msra.mxu0 0.0
    %887 = vmatprep.subr.mxu0 0.0
    %888 = vmatpush1.msra.mxu0 0.0
    %889 = vmatprep.subr.mxu0 0.0
    %890 = vmatpush1.msra.mxu0 0.0
    %891 = vmatprep.subr.mxu0 0.0
    %892 = vmatpush1.msra.mxu0 0.0
    %893 = vmatprep.subr.mxu0 0.0
    %894 = vmatpush1.msra.mxu0 0.0
    %895 = vmatprep.subr.mxu0 0.0
    %896 = vmatpush1.msra.mxu0 0.0
    %897 = vmatprep.subr.mxu0 0.0
    %898 = vmatpush1.msra.mxu0 0.0
    %899 = vmatprep.subr.mxu0 0.0
    %900 = vmatpush1.msra.mxu0 0.0
    %901 = vmatprep.subr.mxu0 0.0
    %902 = vmatpush1.msra.mxu0 0.0
    %903 = vmatprep.subr.mxu0 0.0
    %904 = vmatpush1.msra.mxu0 0.0
    %905 = vmatprep.subr.mxu0 0.0
    %906 = vmatpush1.msra.mxu0 0.0
    %907 = vmatprep.subr.mxu0 0.0
    %908 = vmatpush1.msra.mxu0 0.0
    %909 = vmatprep.subr.mxu0 0.0
    %910 = vmatpush1.msra.mxu0 0.0
    %911 = vmatprep.subr.mxu0 0.0
    %912 = vmatpush1.msra.mxu0 0.0
    %913 = vmatprep.subr.mxu0 0.0
    %914 = vmatpush1.msra.mxu0 0.0
    %915 = vmatprep.subr.mxu0 0.0
    %916 = vmatpush1.msra.mxu0 0.0
    %917 = vmatprep.mubr.f32.mxu0 0.0
    %918 = vmatmul.mubr.f32.gmra.mrb[0].mxu0 %v183
    %v919 = vpop.f32.mrb[0].mxu0
    %v920 = vadd.f32 0.0, %v919
    %v921 = vpop.f32.mrb[0].mxu0
    %922 = vdwg.mxu0
    %v923 = vlaneseq
    %v924 = vshrl.u32 %v923, 7
    %v925 = vsub.s32 6, %v924
    %v926 = vrot.slane %v104, %v925
    %v927 = vmul.f32 %v920, %v926
    %s928 = sadd.s32 0, 6
    %s929 = scalar_lea.vmem [#allocation9], %s928
    %930 = vst [vmem:[%s929] sm:$0x1] %v927
    %s931 = sadd.s32 %s928, 8
    %s932 = scalar_lea.vmem [#allocation9], %s931
    %933 = vst [vmem:[%s932 - $0x1] sm:$0x2] %v927
    %s934 = sadd.s32 %s928, 16
    %s935 = scalar_lea.vmem [#allocation9], %s934
    %936 = vst [vmem:[%s935 - $0x2] sm:$0x4] %v927
    %v937 = vlaneseq
    %v938 = vshrl.u32 %v937, 7
    %v939 = vsub.s32 7, %v938
    %v940 = vrot.slane %v152, %v939
    %vm941 = vcmp.eq.s32.totalorder %v58, %v940
    %vm942 = vcmp.eq.s32.totalorder %v59, %v940
    %vm943 = vcmp.eq.s32.totalorder %v60, %v940
    %vm944 = vcmp.eq.s32.totalorder %v61, %v940
    %vm945 = vcmp.eq.s32.totalorder %v62, %v940
    %vm946 = vcmp.eq.s32.totalorder %v63, %v940
    %vm947 = vcmp.eq.s32.totalorder %v64, %v940
    %vm948 = vcmp.eq.s32.totalorder %v65, %v940
    %v949 = vsel %vm941, 1, 0
    %v950 = vsel %vm942, 1, 0
    %v951 = vsel %vm943, 1, 0
    %v952 = vsel %vm944, 1, 0
    %v953 = vsel %vm945, 1, 0
    %v954 = vsel %vm946, 1, 0
    %v955 = vsel %vm947, 1, 0
    %v956 = vsel %vm948, 1, 0
    %v957 = vcvt.s32.f32 %v949
    %v958 = vcvt.s32.f32 %v950
    %v959 = vcvt.s32.f32 %v951
    %v960 = vcvt.s32.f32 %v952
    %v961 = vcvt.s32.f32 %v953
    %v962 = vcvt.s32.f32 %v954
    %v963 = vcvt.s32.f32 %v955
    %v964 = vcvt.s32.f32 %v956
    %965 = vmatprep.subr.mxu0 0.0
    %966 = vmatpush1.msra.mxu0 %v957
    %967 = vmatprep.subr.mxu0 0.0
    %968 = vmatpush1.msra.mxu0 %v958
    %969 = vmatprep.subr.mxu0 0.0
    %970 = vmatpush1.msra.mxu0 %v959
    %971 = vmatprep.subr.mxu0 0.0
    %972 = vmatpush1.msra.mxu0 %v960
    %973 = vmatprep.subr.mxu0 0.0
    %974 = vmatpush1.msra.mxu0 %v961
    %975 = vmatprep.subr.mxu0 0.0
    %976 = vmatpush1.msra.mxu0 %v962
    %977 = vmatprep.subr.mxu0 0.0
    %978 = vmatpush1.msra.mxu0 %v963
    %979 = vmatprep.subr.mxu0 0.0
    %980 = vmatpush1.msra.mxu0 %v964
    %981 = vmatprep.subr.mxu0 0.0
    %982 = vmatpush1.msra.mxu0 0.0
    %983 = vmatprep.subr.mxu0 0.0
    %984 = vmatpush1.msra.mxu0 0.0
    %985 = vmatprep.subr.mxu0 0.0
    %986 = vmatpush1.msra.mxu0 0.0
    %987 = vmatprep.subr.mxu0 0.0
    %988 = vmatpush1.msra.mxu0 0.0
    %989 = vmatprep.subr.mxu0 0.0
    %990 = vmatpush1.msra.mxu0 0.0
    %991 = vmatprep.subr.mxu0 0.0
    %992 = vmatpush1.msra.mxu0 0.0
    %993 = vmatprep.subr.mxu0 0.0
    %994 = vmatpush1.msra.mxu0 0.0
    %995 = vmatprep.subr.mxu0 0.0
    %996 = vmatpush1.msra.mxu0 0.0
    %997 = vmatprep.subr.mxu0 0.0
    %998 = vmatpush1.msra.mxu0 0.0
    %999 = vmatprep.subr.mxu0 0.0
    %1000 = vmatpush1.msra.mxu0 0.0
    %1001 = vmatprep.subr.mxu0 0.0
    %1002 = vmatpush1.msra.mxu0 0.0
    %1003 = vmatprep.subr.mxu0 0.0
    %1004 = vmatpush1.msra.mxu0 0.0
    %1005 = vmatprep.subr.mxu0 0.0
    %1006 = vmatpush1.msra.mxu0 0.0
    %1007 = vmatprep.subr.mxu0 0.0
    %1008 = vmatpush1.msra.mxu0 0.0
    %1009 = vmatprep.subr.mxu0 0.0
    %1010 = vmatpush1.msra.mxu0 0.0
    %1011 = vmatprep.subr.mxu0 0.0
    %1012 = vmatpush1.msra.mxu0 0.0
    %1013 = vmatprep.subr.mxu0 0.0
    %1014 = vmatpush1.msra.mxu0 0.0
    %1015 = vmatprep.subr.mxu0 0.0
    %1016 = vmatpush1.msra.mxu0 0.0
    %1017 = vmatprep.subr.mxu0 0.0
    %1018 = vmatpush1.msra.mxu0 0.0
    %1019 = vmatprep.subr.mxu0 0.0
    %1020 = vmatpush1.msra.mxu0 0.0
    %1021 = vmatprep.subr.mxu0 0.0
    %1022 = vmatpush1.msra.mxu0 0.0
    %1023 = vmatprep.subr.mxu0 0.0
    %1024 = vmatpush1.msra.mxu0 0.0
    %1025 = vmatprep.subr.mxu0 0.0
    %1026 = vmatpush1.msra.mxu0 0.0
    %1027 = vmatprep.subr.mxu0 0.0
    %1028 = vmatpush1.msra.mxu0 0.0
    %1029 = vmatprep.mubr.f32.mxu0 0.0
    %1030 = vmatmul.mubr.f32.gmra.mrb[0].mxu0 %v183
    %v1031 = vpop.f32.mrb[0].mxu0
    %v1032 = vadd.f32 0.0, %v1031
    %v1033 = vpop.f32.mrb[0].mxu0
    %1034 = vdwg.mxu0
    %v1035 = vlaneseq
    %v1036 = vshrl.u32 %v1035, 7
    %v1037 = vsub.s32 7, %v1036
    %v1038 = vrot.slane %v104, %v1037
    %v1039 = vmul.f32 %v1032, %v1038
    %s1040 = sadd.s32 0, 7
    %s1041 = scalar_lea.vmem [#allocation9], %s1040
    %1042 = vst [vmem:[%s1041] sm:$0x1] %v1039
    %s1043 = sadd.s32 %s1040, 8
    %s1044 = scalar_lea.vmem [#allocation9], %s1043
    %1045 = vst [vmem:[%s1044 - $0x1] sm:$0x2] %v1039
    %s1046 = sadd.s32 %s1040, 16
    %s1047 = scalar_lea.vmem [#allocation9], %s1046
    %1048 = vst [vmem:[%s1047 - $0x2] sm:$0x4] %v1039
    // Predicated region
    $region26: #{tpu_custom_call.1} parent=1 // pred_check
      _
    $region27: #{tpu_custom_call.1} parent=1 // pred_check_branch
      %1050 = sbr.rel (0) target = $region29
    $region28: #{tpu_custom_call.1} parent=1 // pred_region
      %s1052 = ssub.s32 384, 384
      %1053 = vsyncadd [#allocation4], %s1052
      %s1054 = sshll.u32 [#allocation9], 4
      %s1055 = int_to_ptr.vmem [resolvable:$true] %s1054
      %1060 = dma.vmem_to_hbm [thread:$0]  %s1055, 384, %s3, [#allocation4], 128, 128, 8
    $region29: #{tpu_custom_call.1} parent=1 // pred_fallthru
      _
    // Predicated region
    $region30: #{tpu_custom_call.1} parent=1 // pred_check
      _
    $region31: #{tpu_custom_call.1} parent=1 // pred_check_branch
      %1062 = sbr.rel (0) target = $region33
    $region32: #{tpu_custom_call.1} parent=1 // pred_region
      %1063 = dma.done [#allocation4], 384
    $region33: #{tpu_custom_call.1} parent=1 // pred_fallthru
      _
    %1064 = vsyncpa [#allocation3], 1
    %1065 = vsyncpa [#allocation8], 1
    %1066 = vsyncpa [#allocation4], 1
    %1067 = vsyncpa [#allocation5], 1

</llo_original>
